<compile_context>
chip_gen: v5e
topology: v5e:2x2
jax: 0.10.0
libtpu: 0.0.40
codegen_flags: <defaults>
</compile_context>

<pallas_src>
import jax
import jax.numpy as jnp
from jax.experimental import pallas as pl
from jax.experimental.pallas import tpu as pltpu


# ---------------------------------------------------------------------------
# Fused kernel: PLIF + 3x3/stride-2 conv + 1x1/stride-2 shortcut + bias.
# grid = (B, T); per step it processes one full (2,2,H2,W2,C) quadrant frame.
# ---------------------------------------------------------------------------
def _spiking_ped_kernel(w_sn_ref,   # SMEM (1,)  f32 : 1/tau = sigmoid(w_param)
                        x_ref,      # VMEM (2,2,H2,W2,C) f32 : input quadrants
                        w3_ref,     # VMEM (9,C,N) bf16 : 3x3 conv taps
                        w1_ref,     # VMEM (C,N)   f32  : 1x1 shortcut weights
                        b_ref,      # VMEM (1,N)   f32  : fused bias
                        o_ref,      # VMEM (N,H2*W2) f32 : output frame (NCHW)
                        v_ref,      # VMEM (2,2,H2,W2,C) f32 : membrane state
                        s_ref):     # VMEM (2,2,H2+1,W2+1,C) bf16 : spikes+halo
    t = pl.program_id(1)
    _, _, H2, W2, C = x_ref.shape
    N = o_ref.shape[0]
    M = H2 * W2

    # --- per-sequence init: membrane = 0, spike halos = 0 (stay 0 forever) ---
    @pl.when(t == 0)
    def _():
        v_ref[...] = jnp.zeros_like(v_ref)
        s_ref[...] = jnp.zeros_like(s_ref)

    # --- PLIF neuronal dynamics (f32, decay_input, hard reset, v_th = 1) ---
    w = w_sn_ref[0]
    x = x_ref[...].astype(jnp.float32)
    v = v_ref[...] + (x - v_ref[...]) * w             # charge
    spike = (v >= 1.0).astype(jnp.float32)            # fire (Heaviside)
    v_ref[...] = v * (1.0 - spike)                    # hard reset, v_reset = 0

    # write spikes into the zero-halo'd scratch (interior only), exact in bf16
    spk = spike.astype(s_ref.dtype)
    for ph in range(2):
        for pw in range(2):
            s_ref[ph, pw, pl.ds(1, H2), pl.ds(1, W2), :] = spk[ph, pw]

    # --- fused 3x3 conv (spikes) + 1x1 shortcut (x) + bias, f32 accumulate ---
    # tap (kh, kw) of the stride-2 / pad-1 conv reads original pixel
    # (2*h2 + kh - 1, 2*w2 + kw - 1) = quadrant ((kh+1)%2, (kw+1)%2) shifted by
    # (dh, dw) in {-1, 0}; the shift is a contiguous slice of the halo'd buffer.
    acc = jnp.zeros((M, N), jnp.float32)
    for kh in range(3):
        ph = (kh + 1) % 2
        dh = -1 if kh == 0 else 0
        for kw in range(3):
            pw = (kw + 1) % 2
            dw = -1 if kw == 0 else 0
            tap = s_ref[ph, pw, pl.ds(1 + dh, H2), pl.ds(1 + dw, W2), :]
            acc += jnp.dot(tap.reshape(M, C), w3_ref[kh * 3 + kw],
                           preferred_element_type=jnp.float32)

    # 1x1 stride-2 shortcut reads x at even rows/cols = quadrant (0, 0); keep
    # this raw-activation path entirely in f32 (review correctness concern).
    res = x[0, 0].reshape(M, C)
    acc += jnp.dot(res, w1_ref[...], preferred_element_type=jnp.float32)
    acc += b_ref[...]

    # emit the NCHW orientation directly: (out_c, H2*W2), lane-dense spatial.
    o_ref[...] = jnp.transpose(acc, (1, 0))


# ---------------------------------------------------------------------------
# Wrapper: SpikingPEDLayer.forward (norm=None)
# ---------------------------------------------------------------------------
def spiking_ped_forward(x, params, patch_resolution):
    T, B, C, H, W = x.shape
    H2, W2 = patch_resolution
    assert H == 2 * H2 and W == 2 * W2, "PED layer halves the resolution"
    out_c = params["conv_w"].shape[0]

    # Single layout pass over x: pixel-parity quadrants, channels-last.
    # xq[t,b,ph,pw,h2,w2,c] = x[t,b,c,2*h2+ph,2*w2+pw]
    # TODO(synk): fold this space-to-depth into the kernel via strided DMA so
    # x is consumed straight from its NCHW layout.
    xq = x.reshape(T, B, C, H2, 2, W2, 2).transpose(0, 1, 4, 6, 3, 5, 2)
    xq = xq.astype(jnp.float32)

    # Fused weights / bias (tiny, prepared once).
    w3 = params["conv_w"].transpose(2, 3, 1, 0).reshape(9, C, out_c)
    w3 = w3.astype(jnp.bfloat16)                       # spike path: bf16 MXU
    w1 = params["conv_res_w"].reshape(out_c, C).T.astype(jnp.float32)
    bias = (params["conv_b"] + params["conv_res_b"]).reshape(1, out_c)
    bias = bias.astype(jnp.float32)
    # ParametricLIFNode: 1/tau = sigmoid(w_param)
    w_sn = jax.nn.sigmoid(params["w_param"]).reshape(1).astype(jnp.float32)

    flops = int(2 * T * B * H2 * W2 * C * out_c * 10 + 5 * T * B * H * W * C)
    bytes_accessed = int(xq.size * 4 + T * B * out_c * H2 * W2 * 4
                         + w3.size * 2 + w1.size * 4)

    out = pl.pallas_call(
        _spiking_ped_kernel,
        out_shape=jax.ShapeDtypeStruct((T, B, out_c, H2 * W2), jnp.float32),
        grid=(B, T),
        in_specs=[
            pl.BlockSpec(memory_space=pltpu.MemorySpace.SMEM),        # 1/tau
            pl.BlockSpec((None, None, 2, 2, H2, W2, C),               # x quads
                         lambda b, t: (t, b, 0, 0, 0, 0, 0)),
            pl.BlockSpec((9, C, out_c), lambda b, t: (0, 0, 0)),      # conv w
            pl.BlockSpec((C, out_c), lambda b, t: (0, 0)),            # res  w
            pl.BlockSpec((1, out_c), lambda b, t: (0, 0)),            # bias
        ],
        out_specs=pl.BlockSpec((None, None, out_c, H2 * W2),
                               lambda b, t: (t, b, 0, 0)),
        scratch_shapes=[
            pltpu.VMEM((2, 2, H2, W2, C), jnp.float32),               # membrane
            pltpu.VMEM((2, 2, H2 + 1, W2 + 1, C), jnp.bfloat16),      # spikes
        ],
        compiler_params=pltpu.CompilerParams(
            dimension_semantics=("parallel", "arbitrary")),
        cost_estimate=pl.CostEstimate(
            flops=flops, transcendentals=0, bytes_accessed=bytes_accessed),
    )(w_sn, xq, w3, w1, bias)

    # Minor-dim split only -> free reshape; output is already NCHW-oriented.
    return out.reshape(T, B, out_c, H2, W2)


# ---------------------------------------------------------------------------
# Pure-JAX reference for the correctness check.
# ---------------------------------------------------------------------------
def reference_forward(x, params, patch_resolution):
    T, B, C, H, W = x.shape
    w = jax.nn.sigmoid(params["w_param"])

    def step(v, xt):
        v = v + (xt - v) * w
        s = (v >= 1.0).astype(x.dtype)
        return v * (1.0 - s), s

    _, spikes = jax.lax.scan(step, jnp.zeros((B, C, H, W), x.dtype), x)
    s = spikes.reshape(T * B, C, H, W)
    xr = x.reshape(T * B, C, H, W)
    dn = ("NCHW", "OIHW", "NCHW")
    conv = jax.lax.conv_general_dilated(
        s, params["conv_w"], (2, 2), ((1, 1), (1, 1)), dimension_numbers=dn)
    conv = conv + params["conv_b"][None, :, None, None]
    res = jax.lax.conv_general_dilated(
        xr, params["conv_res_w"], (2, 2), ((0, 0), (0, 0)),
        dimension_numbers=dn)
    res = res + params["conv_res_b"][None, :, None, None]
    return (conv + res).reshape(T, B, -1, *patch_resolution)


if __name__ == "__main__":
    # Small shapes consistent with the module: x is (T, B, C, H, W).
    T, B, C, H, W = 2, 2, 4, 16, 16
    out_c = 8
    H2, W2 = H // 2, W // 2                     # patch_resolution

    key = jax.random.PRNGKey(0)
    k1, k2, k3, k4, k5 = jax.random.split(key, 5)
    # Scale up a bit so a healthy number of neurons actually spike.
    x = 2.0 * jax.random.normal(k1, (T, B, C, H, W), jnp.float32)

    params = {
        "conv_w":     0.1 * jax.random.normal(k2, (out_c, C, 3, 3), jnp.float32),
        "conv_b":     0.05 * jax.random.normal(k3, (out_c,), jnp.float32),
        "conv_res_w": 0.1 * jax.random.normal(k4, (out_c, C, 1, 1), jnp.float32),
        "conv_res_b": 0.05 * jax.random.normal(k5, (out_c,), jnp.float32),
        # ParametricLIFNode: w = -log(init_tau - 1), init_tau = 2.0 -> 0.0
        "w_param":    jnp.float32(0.0),
    }

    fwd = jax.jit(spiking_ped_forward, static_argnums=(2,))
    out = jax.block_until_ready(fwd(x, params, (H2, W2)))
    assert out.shape == (T, B, out_c, H2, W2), out.shape

    ref = jax.block_until_ready(reference_forward(x, params, (H2, W2)))
    err = float(jnp.max(jnp.abs(out - ref)))
    assert jnp.allclose(out, ref, atol=1e-2, rtol=1e-2), err

    print("KERNEL_OK")
</pallas_src>

<mosaic_0001>
module attributes {stable_mosaic.version = 11 : i64} {
  func.func @_spiking_ped_kernel(%arg0: i32, %arg1: i32, %arg2: memref<1xf32, #tpu.memory_space<smem>>, %arg3: memref<1x1x2x2x8x8x4xf32, #tpu.memory_space<vmem>>, %arg4: memref<9x4x8xbf16, #tpu.memory_space<vmem>>, %arg5: memref<4x8xf32, #tpu.memory_space<vmem>>, %arg6: memref<1x8xf32, #tpu.memory_space<vmem>>, %arg7: memref<1x1x8x64xf32, #tpu.memory_space<vmem>>, %arg8: memref<2x2x8x8x4xf32, #tpu.memory_space<vmem>>, %arg9: memref<2x2x9x9x4xbf16, #tpu.memory_space<vmem>>) attributes {dimension_semantics = [#tpu.dimension_semantics<parallel>, #tpu.dimension_semantics<arbitrary>], iteration_bounds = array<i64: 2, 2>, scalar_prefetch = 0 : i64, scratch_operands = 2 : i64, tpu.core_type = #tpu.core_type<tc>, window_params = [{transform_indices = @transform_0, window_bounds = array<i64: 1>}, {transform_indices = @transform_1, window_bounds = array<i64: 1, 1, 2, 2, 8, 8, 4>}, {pipeline_mode = #tpu.pipeline_mode<synchronous>, transform_indices = @transform_2, window_bounds = array<i64: 9, 4, 8>}, {pipeline_mode = #tpu.pipeline_mode<synchronous>, transform_indices = @transform_3, window_bounds = array<i64: 4, 8>}, {pipeline_mode = #tpu.pipeline_mode<synchronous>, transform_indices = @transform_4, window_bounds = array<i64: 1, 8>}, {transform_indices = @transform_5, window_bounds = array<i64: 1, 1, 8, 64>}]} {
    %c0_i32 = arith.constant 0 : i32
    %0 = arith.cmpi eq, %arg1, %c0_i32 : i32
    %1 = arith.extui %0 : i1 to i32
    %c0_i32_0 = arith.constant 0 : i32
    %2 = arith.cmpi ne, %1, %c0_i32_0 : i32
    scf.if %2 {
      %cst_127 = arith.constant 0.000000e+00 : f32
      %118 = vector.broadcast %cst_127 : f32 to vector<2x2x8x8x4xf32>
      %c0_128 = arith.constant 0 : index
      %c0_129 = arith.constant 0 : index
      %c0_130 = arith.constant 0 : index
      %c0_131 = arith.constant 0 : index
      %c0_132 = arith.constant 0 : index
      %119 = vector.load %arg8[%c0_128, %c0_129, %c0_130, %c0_131, %c0_132] : memref<2x2x8x8x4xf32, #tpu.memory_space<vmem>>, vector<2x2x8x8x4xf32>
      tpu.vector_store %arg8[%c0_128, %c0_129, %c0_130, %c0_131, %c0_132], %118 {strides = array<i32>} : memref<2x2x8x8x4xf32, #tpu.memory_space<vmem>>, vector<2x2x8x8x4xf32>,
      %cst_133 = arith.constant 0.000000e+00 : bf16
      %120 = vector.broadcast %cst_133 : bf16 to vector<2x2x9x9x4xbf16>
      %c0_134 = arith.constant 0 : index
      %c0_135 = arith.constant 0 : index
      %c0_136 = arith.constant 0 : index
      %c0_137 = arith.constant 0 : index
      %c0_138 = arith.constant 0 : index
      %121 = vector.load %arg9[%c0_134, %c0_135, %c0_136, %c0_137, %c0_138] : memref<2x2x9x9x4xbf16, #tpu.memory_space<vmem>>, vector<2x2x9x9x4xbf16>
      tpu.vector_store %arg9[%c0_134, %c0_135, %c0_136, %c0_137, %c0_138], %120 {strides = array<i32>} : memref<2x2x9x9x4xbf16, #tpu.memory_space<vmem>>, vector<2x2x9x9x4xbf16>,
    } else {
    }
    %c0 = arith.constant 0 : index
    %3 = memref.load %arg2[%c0] : memref<1xf32, #tpu.memory_space<smem>>
    %c0_1 = arith.constant 0 : index
    %c0_2 = arith.constant 0 : index
    %c0_3 = arith.constant 0 : index
    %c0_4 = arith.constant 0 : index
    %c0_5 = arith.constant 0 : index
    %c0_6 = arith.constant 0 : index
    %c0_7 = arith.constant 0 : index
    %4 = vector.load %arg3[%c0_1, %c0_2, %c0_3, %c0_4, %c0_5, %c0_6, %c0_7] : memref<1x1x2x2x8x8x4xf32, #tpu.memory_space<vmem>>, vector<1x1x2x2x8x8x4xf32>
    %5 = vector.shape_cast %4 : vector<1x1x2x2x8x8x4xf32> to vector<2x2x8x8x4xf32>
    %c0_8 = arith.constant 0 : index
    %c0_9 = arith.constant 0 : index
    %c0_10 = arith.constant 0 : index
    %c0_11 = arith.constant 0 : index
    %c0_12 = arith.constant 0 : index
    %6 = vector.load %arg8[%c0_8, %c0_9, %c0_10, %c0_11, %c0_12] : memref<2x2x8x8x4xf32, #tpu.memory_space<vmem>>, vector<2x2x8x8x4xf32>
    %c0_13 = arith.constant 0 : index
    %c0_14 = arith.constant 0 : index
    %c0_15 = arith.constant 0 : index
    %c0_16 = arith.constant 0 : index
    %c0_17 = arith.constant 0 : index
    %7 = vector.load %arg8[%c0_13, %c0_14, %c0_15, %c0_16, %c0_17] : memref<2x2x8x8x4xf32, #tpu.memory_space<vmem>>, vector<2x2x8x8x4xf32>
    %8 = arith.subf %5, %7 : vector<2x2x8x8x4xf32>
    %9 = vector.broadcast %3 : f32 to vector<2x2x8x8x4xf32>
    %10 = arith.mulf %8, %9 : vector<2x2x8x8x4xf32>
    %11 = arith.addf %6, %10 : vector<2x2x8x8x4xf32>
    %cst = arith.constant 1.000000e+00 : f32
    %12 = vector.broadcast %cst : f32 to vector<2x2x8x8x4xf32>
    %13 = arith.cmpf oge, %11, %12 : vector<2x2x8x8x4xf32>
    %14 = arith.extui %13 : vector<2x2x8x8x4xi1> to vector<2x2x8x8x4xi32>
    %15 = arith.sitofp %14 : vector<2x2x8x8x4xi32> to vector<2x2x8x8x4xf32>
    %cst_18 = arith.constant 1.000000e+00 : f32
    %16 = vector.broadcast %cst_18 : f32 to vector<2x2x8x8x4xf32>
    %17 = arith.subf %16, %15 : vector<2x2x8x8x4xf32>
    %18 = arith.mulf %11, %17 : vector<2x2x8x8x4xf32>
    %c0_19 = arith.constant 0 : index
    %c0_20 = arith.constant 0 : index
    %c0_21 = arith.constant 0 : index
    %c0_22 = arith.constant 0 : index
    %c0_23 = arith.constant 0 : index
    %19 = vector.load %arg8[%c0_19, %c0_20, %c0_21, %c0_22, %c0_23] : memref<2x2x8x8x4xf32, #tpu.memory_space<vmem>>, vector<2x2x8x8x4xf32>
    tpu.vector_store %arg8[%c0_19, %c0_20, %c0_21, %c0_22, %c0_23], %18 {strides = array<i32>} : memref<2x2x8x8x4xf32, #tpu.memory_space<vmem>>, vector<2x2x8x8x4xf32>,
    %20 = arith.truncf %15 : vector<2x2x8x8x4xf32> to vector<2x2x8x8x4xbf16>
    %21 = vector.extract_strided_slice %20 {offsets = [0, 0, 0, 0, 0], sizes = [1, 1, 8, 8, 4], strides = [1, 1, 1, 1, 1]} : vector<2x2x8x8x4xbf16> to vector<1x1x8x8x4xbf16>
    %22 = vector.shape_cast %21 : vector<1x1x8x8x4xbf16> to vector<8x8x4xbf16>
    %c0_24 = arith.constant 0 : index
    %c0_25 = arith.constant 0 : index
    %c1 = arith.constant 1 : index
    %c1_26 = arith.constant 1 : index
    %c0_27 = arith.constant 0 : index
    %23 = vector.load %arg9[%c0_24, %c0_25, %c1, %c1_26, %c0_27] : memref<2x2x9x9x4xbf16, #tpu.memory_space<vmem>>, vector<1x1x8x8x4xbf16>
    %24 = vector.shape_cast %23 : vector<1x1x8x8x4xbf16> to vector<8x8x4xbf16>
    %25 = vector.shape_cast %22 : vector<8x8x4xbf16> to vector<1x1x8x8x4xbf16>
    tpu.vector_store %arg9[%c0_24, %c0_25, %c1, %c1_26, %c0_27], %25 {strides = array<i32>} : memref<2x2x9x9x4xbf16, #tpu.memory_space<vmem>>, vector<1x1x8x8x4xbf16>,
    %26 = vector.extract_strided_slice %20 {offsets = [0, 1, 0, 0, 0], sizes = [1, 1, 8, 8, 4], strides = [1, 1, 1, 1, 1]} : vector<2x2x8x8x4xbf16> to vector<1x1x8x8x4xbf16>
    %27 = vector.shape_cast %26 : vector<1x1x8x8x4xbf16> to vector<8x8x4xbf16>
    %c0_28 = arith.constant 0 : index
    %c1_29 = arith.constant 1 : index
    %c1_30 = arith.constant 1 : index
    %c1_31 = arith.constant 1 : index
    %c0_32 = arith.constant 0 : index
    %28 = vector.load %arg9[%c0_28, %c1_29, %c1_30, %c1_31, %c0_32] : memref<2x2x9x9x4xbf16, #tpu.memory_space<vmem>>, vector<1x1x8x8x4xbf16>
    %29 = vector.shape_cast %28 : vector<1x1x8x8x4xbf16> to vector<8x8x4xbf16>
    %30 = vector.shape_cast %27 : vector<8x8x4xbf16> to vector<1x1x8x8x4xbf16>
    tpu.vector_store %arg9[%c0_28, %c1_29, %c1_30, %c1_31, %c0_32], %30 {strides = array<i32>} : memref<2x2x9x9x4xbf16, #tpu.memory_space<vmem>>, vector<1x1x8x8x4xbf16>,
    %31 = vector.extract_strided_slice %20 {offsets = [1, 0, 0, 0, 0], sizes = [1, 1, 8, 8, 4], strides = [1, 1, 1, 1, 1]} : vector<2x2x8x8x4xbf16> to vector<1x1x8x8x4xbf16>
    %32 = vector.shape_cast %31 : vector<1x1x8x8x4xbf16> to vector<8x8x4xbf16>
    %c1_33 = arith.constant 1 : index
    %c0_34 = arith.constant 0 : index
    %c1_35 = arith.constant 1 : index
    %c1_36 = arith.constant 1 : index
    %c0_37 = arith.constant 0 : index
    %33 = vector.load %arg9[%c1_33, %c0_34, %c1_35, %c1_36, %c0_37] : memref<2x2x9x9x4xbf16, #tpu.memory_space<vmem>>, vector<1x1x8x8x4xbf16>
    %34 = vector.shape_cast %33 : vector<1x1x8x8x4xbf16> to vector<8x8x4xbf16>
    %35 = vector.shape_cast %32 : vector<8x8x4xbf16> to vector<1x1x8x8x4xbf16>
    tpu.vector_store %arg9[%c1_33, %c0_34, %c1_35, %c1_36, %c0_37], %35 {strides = array<i32>} : memref<2x2x9x9x4xbf16, #tpu.memory_space<vmem>>, vector<1x1x8x8x4xbf16>,
    %36 = vector.extract_strided_slice %20 {offsets = [1, 1, 0, 0, 0], sizes = [1, 1, 8, 8, 4], strides = [1, 1, 1, 1, 1]} : vector<2x2x8x8x4xbf16> to vector<1x1x8x8x4xbf16>
    %37 = vector.shape_cast %36 : vector<1x1x8x8x4xbf16> to vector<8x8x4xbf16>
    %c1_38 = arith.constant 1 : index
    %c1_39 = arith.constant 1 : index
    %c1_40 = arith.constant 1 : index
    %c1_41 = arith.constant 1 : index
    %c0_42 = arith.constant 0 : index
    %38 = vector.load %arg9[%c1_38, %c1_39, %c1_40, %c1_41, %c0_42] : memref<2x2x9x9x4xbf16, #tpu.memory_space<vmem>>, vector<1x1x8x8x4xbf16>
    %39 = vector.shape_cast %38 : vector<1x1x8x8x4xbf16> to vector<8x8x4xbf16>
    %40 = vector.shape_cast %37 : vector<8x8x4xbf16> to vector<1x1x8x8x4xbf16>
    tpu.vector_store %arg9[%c1_38, %c1_39, %c1_40, %c1_41, %c0_42], %40 {strides = array<i32>} : memref<2x2x9x9x4xbf16, #tpu.memory_space<vmem>>, vector<1x1x8x8x4xbf16>,
    %cst_43 = arith.constant 0.000000e+00 : f32
    %41 = vector.broadcast %cst_43 : f32 to vector<64x8xf32>
    %c1_44 = arith.constant 1 : index
    %c1_45 = arith.constant 1 : index
    %c0_46 = arith.constant 0 : index
    %c0_47 = arith.constant 0 : index
    %c0_48 = arith.constant 0 : index
    %42 = vector.load %arg9[%c1_44, %c1_45, %c0_46, %c0_47, %c0_48] : memref<2x2x9x9x4xbf16, #tpu.memory_space<vmem>>, vector<1x1x8x8x4xbf16>
    %43 = vector.shape_cast %42 : vector<1x1x8x8x4xbf16> to vector<8x8x4xbf16>
    %44 = vector.shape_cast %43 : vector<8x8x4xbf16> to vector<64x4xbf16>
    %c0_49 = arith.constant 0 : index
    %c0_50 = arith.constant 0 : index
    %c0_51 = arith.constant 0 : index
    %45 = vector.load %arg4[%c0_49, %c0_50, %c0_51] : memref<9x4x8xbf16, #tpu.memory_space<vmem>>, vector<1x4x8xbf16>
    %46 = vector.shape_cast %45 : vector<1x4x8xbf16> to vector<4x8xbf16>
    %cst_52 = arith.constant dense<0.000000e+00> : vector<64x8xf32>
    %47 = tpu.matmul %44, %46, %cst_52 {dimension_numbers = #tpu.dot_dimension_numbers<[1], [0], [0], [1], [0, 0, 1, 1], [], []>} : vector<64x4xbf16>, vector<4x8xbf16>, vector<64x8xf32> -> vector<64x8xf32>
    %48 = arith.addf %41, %47 : vector<64x8xf32>
    %c1_53 = arith.constant 1 : index
    %c0_54 = arith.constant 0 : index
    %c0_55 = arith.constant 0 : index
    %c1_56 = arith.constant 1 : index
    %c0_57 = arith.constant 0 : index
    %49 = vector.load %arg9[%c1_53, %c0_54, %c0_55, %c1_56, %c0_57] : memref<2x2x9x9x4xbf16, #tpu.memory_space<vmem>>, vector<1x1x8x8x4xbf16>
    %50 = vector.shape_cast %49 : vector<1x1x8x8x4xbf16> to vector<8x8x4xbf16>
    %51 = vector.shape_cast %50 : vector<8x8x4xbf16> to vector<64x4xbf16>
    %c1_58 = arith.constant 1 : index
    %c0_59 = arith.constant 0 : index
    %c0_60 = arith.constant 0 : index
    %52 = vector.load %arg4[%c1_58, %c0_59, %c0_60] : memref<9x4x8xbf16, #tpu.memory_space<vmem>>, vector<1x4x8xbf16>
    %53 = vector.shape_cast %52 : vector<1x4x8xbf16> to vector<4x8xbf16>
    %cst_61 = arith.constant dense<0.000000e+00> : vector<64x8xf32>
    %54 = tpu.matmul %51, %53, %cst_61 {dimension_numbers = #tpu.dot_dimension_numbers<[1], [0], [0], [1], [0, 0, 1, 1], [], []>} : vector<64x4xbf16>, vector<4x8xbf16>, vector<64x8xf32> -> vector<64x8xf32>
    %55 = arith.addf %48, %54 : vector<64x8xf32>
    %c1_62 = arith.constant 1 : index
    %c1_63 = arith.constant 1 : index
    %c0_64 = arith.constant 0 : index
    %c1_65 = arith.constant 1 : index
    %c0_66 = arith.constant 0 : index
    %56 = vector.load %arg9[%c1_62, %c1_63, %c0_64, %c1_65, %c0_66] : memref<2x2x9x9x4xbf16, #tpu.memory_space<vmem>>, vector<1x1x8x8x4xbf16>
    %57 = vector.shape_cast %56 : vector<1x1x8x8x4xbf16> to vector<8x8x4xbf16>
    %58 = vector.shape_cast %57 : vector<8x8x4xbf16> to vector<64x4xbf16>
    %c2 = arith.constant 2 : index
    %c0_67 = arith.constant 0 : index
    %c0_68 = arith.constant 0 : index
    %59 = vector.load %arg4[%c2, %c0_67, %c0_68] : memref<9x4x8xbf16, #tpu.memory_space<vmem>>, vector<1x4x8xbf16>
    %60 = vector.shape_cast %59 : vector<1x4x8xbf16> to vector<4x8xbf16>
    %cst_69 = arith.constant dense<0.000000e+00> : vector<64x8xf32>
    %61 = tpu.matmul %58, %60, %cst_69 {dimension_numbers = #tpu.dot_dimension_numbers<[1], [0], [0], [1], [0, 0, 1, 1], [], []>} : vector<64x4xbf16>, vector<4x8xbf16>, vector<64x8xf32> -> vector<64x8xf32>
    %62 = arith.addf %55, %61 : vector<64x8xf32>
    %c0_70 = arith.constant 0 : index
    %c1_71 = arith.constant 1 : index
    %c1_72 = arith.constant 1 : index
    %c0_73 = arith.constant 0 : index
    %c0_74 = arith.constant 0 : index
    %63 = vector.load %arg9[%c0_70, %c1_71, %c1_72, %c0_73, %c0_74] : memref<2x2x9x9x4xbf16, #tpu.memory_space<vmem>>, vector<1x1x8x8x4xbf16>
    %64 = vector.shape_cast %63 : vector<1x1x8x8x4xbf16> to vector<8x8x4xbf16>
    %65 = vector.shape_cast %64 : vector<8x8x4xbf16> to vector<64x4xbf16>
    %c3 = arith.constant 3 : index
    %c0_75 = arith.constant 0 : index
    %c0_76 = arith.constant 0 : index
    %66 = vector.load %arg4[%c3, %c0_75, %c0_76] : memref<9x4x8xbf16, #tpu.memory_space<vmem>>, vector<1x4x8xbf16>
    %67 = vector.shape_cast %66 : vector<1x4x8xbf16> to vector<4x8xbf16>
    %cst_77 = arith.constant dense<0.000000e+00> : vector<64x8xf32>
    %68 = tpu.matmul %65, %67, %cst_77 {dimension_numbers = #tpu.dot_dimension_numbers<[1], [0], [0], [1], [0, 0, 1, 1], [], []>} : vector<64x4xbf16>, vector<4x8xbf16>, vector<64x8xf32> -> vector<64x8xf32>
    %69 = arith.addf %62, %68 : vector<64x8xf32>
    %c0_78 = arith.constant 0 : index
    %c0_79 = arith.constant 0 : index
    %c1_80 = arith.constant 1 : index
    %c1_81 = arith.constant 1 : index
    %c0_82 = arith.constant 0 : index
    %70 = vector.load %arg9[%c0_78, %c0_79, %c1_80, %c1_81, %c0_82] : memref<2x2x9x9x4xbf16, #tpu.memory_space<vmem>>, vector<1x1x8x8x4xbf16>
    %71 = vector.shape_cast %70 : vector<1x1x8x8x4xbf16> to vector<8x8x4xbf16>
    %72 = vector.shape_cast %71 : vector<8x8x4xbf16> to vector<64x4xbf16>
    %c4 = arith.constant 4 : index
    %c0_83 = arith.constant 0 : index
    %c0_84 = arith.constant 0 : index
    %73 = vector.load %arg4[%c4, %c0_83, %c0_84] : memref<9x4x8xbf16, #tpu.memory_space<vmem>>, vector<1x4x8xbf16>
    %74 = vector.shape_cast %73 : vector<1x4x8xbf16> to vector<4x8xbf16>
    %cst_85 = arith.constant dense<0.000000e+00> : vector<64x8xf32>
    %75 = tpu.matmul %72, %74, %cst_85 {dimension_numbers = #tpu.dot_dimension_numbers<[1], [0], [0], [1], [0, 0, 1, 1], [], []>} : vector<64x4xbf16>, vector<4x8xbf16>, vector<64x8xf32> -> vector<64x8xf32>
    %76 = arith.addf %69, %75 : vector<64x8xf32>
    %c0_86 = arith.constant 0 : index
    %c1_87 = arith.constant 1 : index
    %c1_88 = arith.constant 1 : index
    %c1_89 = arith.constant 1 : index
    %c0_90 = arith.constant 0 : index
    %77 = vector.load %arg9[%c0_86, %c1_87, %c1_88, %c1_89, %c0_90] : memref<2x2x9x9x4xbf16, #tpu.memory_space<vmem>>, vector<1x1x8x8x4xbf16>
    %78 = vector.shape_cast %77 : vector<1x1x8x8x4xbf16> to vector<8x8x4xbf16>
    %79 = vector.shape_cast %78 : vector<8x8x4xbf16> to vector<64x4xbf16>
    %c5 = arith.constant 5 : index
    %c0_91 = arith.constant 0 : index
    %c0_92 = arith.constant 0 : index
    %80 = vector.load %arg4[%c5, %c0_91, %c0_92] : memref<9x4x8xbf16, #tpu.memory_space<vmem>>, vector<1x4x8xbf16>
    %81 = vector.shape_cast %80 : vector<1x4x8xbf16> to vector<4x8xbf16>
    %cst_93 = arith.constant dense<0.000000e+00> : vector<64x8xf32>
    %82 = tpu.matmul %79, %81, %cst_93 {dimension_numbers = #tpu.dot_dimension_numbers<[1], [0], [0], [1], [0, 0, 1, 1], [], []>} : vector<64x4xbf16>, vector<4x8xbf16>, vector<64x8xf32> -> vector<64x8xf32>
    %83 = arith.addf %76, %82 : vector<64x8xf32>
    %c1_94 = arith.constant 1 : index
    %c1_95 = arith.constant 1 : index
    %c1_96 = arith.constant 1 : index
    %c0_97 = arith.constant 0 : index
    %c0_98 = arith.constant 0 : index
    %84 = vector.load %arg9[%c1_94, %c1_95, %c1_96, %c0_97, %c0_98] : memref<2x2x9x9x4xbf16, #tpu.memory_space<vmem>>, vector<1x1x8x8x4xbf16>
    %85 = vector.shape_cast %84 : vector<1x1x8x8x4xbf16> to vector<8x8x4xbf16>
    %86 = vector.shape_cast %85 : vector<8x8x4xbf16> to vector<64x4xbf16>
    %c6 = arith.constant 6 : index
    %c0_99 = arith.constant 0 : index
    %c0_100 = arith.constant 0 : index
    %87 = vector.load %arg4[%c6, %c0_99, %c0_100] : memref<9x4x8xbf16, #tpu.memory_space<vmem>>, vector<1x4x8xbf16>
    %88 = vector.shape_cast %87 : vector<1x4x8xbf16> to vector<4x8xbf16>
    %cst_101 = arith.constant dense<0.000000e+00> : vector<64x8xf32>
    %89 = tpu.matmul %86, %88, %cst_101 {dimension_numbers = #tpu.dot_dimension_numbers<[1], [0], [0], [1], [0, 0, 1, 1], [], []>} : vector<64x4xbf16>, vector<4x8xbf16>, vector<64x8xf32> -> vector<64x8xf32>
    %90 = arith.addf %83, %89 : vector<64x8xf32>
    %c1_102 = arith.constant 1 : index
    %c0_103 = arith.constant 0 : index
    %c1_104 = arith.constant 1 : index
    %c1_105 = arith.constant 1 : index
    %c0_106 = arith.constant 0 : index
    %91 = vector.load %arg9[%c1_102, %c0_103, %c1_104, %c1_105, %c0_106] : memref<2x2x9x9x4xbf16, #tpu.memory_space<vmem>>, vector<1x1x8x8x4xbf16>
    %92 = vector.shape_cast %91 : vector<1x1x8x8x4xbf16> to vector<8x8x4xbf16>
    %93 = vector.shape_cast %92 : vector<8x8x4xbf16> to vector<64x4xbf16>
    %c7 = arith.constant 7 : index
    %c0_107 = arith.constant 0 : index
    %c0_108 = arith.constant 0 : index
    %94 = vector.load %arg4[%c7, %c0_107, %c0_108] : memref<9x4x8xbf16, #tpu.memory_space<vmem>>, vector<1x4x8xbf16>
    %95 = vector.shape_cast %94 : vector<1x4x8xbf16> to vector<4x8xbf16>
    %cst_109 = arith.constant dense<0.000000e+00> : vector<64x8xf32>
    %96 = tpu.matmul %93, %95, %cst_109 {dimension_numbers = #tpu.dot_dimension_numbers<[1], [0], [0], [1], [0, 0, 1, 1], [], []>} : vector<64x4xbf16>, vector<4x8xbf16>, vector<64x8xf32> -> vector<64x8xf32>
    %97 = arith.addf %90, %96 : vector<64x8xf32>
    %c1_110 = arith.constant 1 : index
    %c1_111 = arith.constant 1 : index
    %c1_112 = arith.constant 1 : index
    %c1_113 = arith.constant 1 : index
    %c0_114 = arith.constant 0 : index
    %98 = vector.load %arg9[%c1_110, %c1_111, %c1_112, %c1_113, %c0_114] : memref<2x2x9x9x4xbf16, #tpu.memory_space<vmem>>, vector<1x1x8x8x4xbf16>
    %99 = vector.shape_cast %98 : vector<1x1x8x8x4xbf16> to vector<8x8x4xbf16>
    %100 = vector.shape_cast %99 : vector<8x8x4xbf16> to vector<64x4xbf16>
    %c8 = arith.constant 8 : index
    %c0_115 = arith.constant 0 : index
    %c0_116 = arith.constant 0 : index
    %101 = vector.load %arg4[%c8, %c0_115, %c0_116] : memref<9x4x8xbf16, #tpu.memory_space<vmem>>, vector<1x4x8xbf16>
    %102 = vector.shape_cast %101 : vector<1x4x8xbf16> to vector<4x8xbf16>
    %cst_117 = arith.constant dense<0.000000e+00> : vector<64x8xf32>
    %103 = tpu.matmul %100, %102, %cst_117 {dimension_numbers = #tpu.dot_dimension_numbers<[1], [0], [0], [1], [0, 0, 1, 1], [], []>} : vector<64x4xbf16>, vector<4x8xbf16>, vector<64x8xf32> -> vector<64x8xf32>
    %104 = arith.addf %97, %103 : vector<64x8xf32>
    %105 = vector.extract_strided_slice %5 {offsets = [0, 0, 0, 0, 0], sizes = [1, 1, 8, 8, 4], strides = [1, 1, 1, 1, 1]} : vector<2x2x8x8x4xf32> to vector<1x1x8x8x4xf32>
    %106 = vector.shape_cast %105 : vector<1x1x8x8x4xf32> to vector<8x8x4xf32>
    %107 = vector.shape_cast %106 : vector<8x8x4xf32> to vector<64x4xf32>
    %c0_118 = arith.constant 0 : index
    %c0_119 = arith.constant 0 : index
    %108 = vector.load %arg5[%c0_118, %c0_119] : memref<4x8xf32, #tpu.memory_space<vmem>>, vector<4x8xf32>
    %cst_120 = arith.constant dense<0.000000e+00> : vector<64x8xf32>
    %109 = tpu.matmul %107, %108, %cst_120 {dimension_numbers = #tpu.dot_dimension_numbers<[1], [0], [0], [1], [0, 0, 1, 1], [], []>} : vector<64x4xf32>, vector<4x8xf32>, vector<64x8xf32> -> vector<64x8xf32>
    %110 = arith.addf %104, %109 : vector<64x8xf32>
    %c0_121 = arith.constant 0 : index
    %c0_122 = arith.constant 0 : index
    %111 = vector.load %arg6[%c0_121, %c0_122] : memref<1x8xf32, #tpu.memory_space<vmem>>, vector<1x8xf32>
    %112 = vector.broadcast %111 : vector<1x8xf32> to vector<64x8xf32>
    %113 = arith.addf %110, %112 : vector<64x8xf32>
    %114 = tpu.transpose %113, [1, 0] : vector<64x8xf32> -> vector<8x64xf32>
    %c0_123 = arith.constant 0 : index
    %c0_124 = arith.constant 0 : index
    %c0_125 = arith.constant 0 : index
    %c0_126 = arith.constant 0 : index
    %115 = vector.load %arg7[%c0_123, %c0_124, %c0_125, %c0_126] : memref<1x1x8x64xf32, #tpu.memory_space<vmem>>, vector<1x1x8x64xf32>
    %116 = vector.shape_cast %115 : vector<1x1x8x64xf32> to vector<8x64xf32>
    %117 = vector.shape_cast %114 : vector<8x64xf32> to vector<1x1x8x64xf32>
    tpu.vector_store %arg7[%c0_123, %c0_124, %c0_125, %c0_126], %117 {strides = array<i32>} : memref<1x1x8x64xf32, #tpu.memory_space<vmem>>, vector<1x1x8x64xf32>,
    return
  }
  func.func @transform_0(%arg0: i32, %arg1: i32) -> i32 {
    %c0_i32 = arith.constant 0 : i32
    %c0_i32_0 = arith.constant 0 : i32
    return %c0_i32 : i32
  }
  func.func @transform_1(%arg0: i32, %arg1: i32) -> (i32, i32, i32, i32, i32, i32, i32) {
    %c0_i32 = arith.constant 0 : i32
    %c0_i32_0 = arith.constant 0 : i32
    %c0_i32_1 = arith.constant 0 : i32
    %c0_i32_2 = arith.constant 0 : i32
    %c0_i32_3 = arith.constant 0 : i32
    %c0_i32_4 = arith.constant 0 : i32
    return %arg1, %arg0, %c0_i32, %c0_i32_0, %c0_i32_1, %c0_i32_2, %c0_i32_3 : i32, i32, i32, i32, i32, i32, i32
  }
  func.func @transform_2(%arg0: i32, %arg1: i32) -> (i32, i32, i32) {
    %c0_i32 = arith.constant 0 : i32
    %c0_i32_0 = arith.constant 0 : i32
    %c0_i32_1 = arith.constant 0 : i32
    %c0_i32_2 = arith.constant 0 : i32
    return %c0_i32, %c0_i32_0, %c0_i32_1 : i32, i32, i32
  }
  func.func @transform_3(%arg0: i32, %arg1: i32) -> (i32, i32) {
    %c0_i32 = arith.constant 0 : i32
    %c0_i32_0 = arith.constant 0 : i32
    %c0_i32_1 = arith.constant 0 : i32
    return %c0_i32, %c0_i32_0 : i32, i32
  }
  func.func @transform_4(%arg0: i32, %arg1: i32) -> (i32, i32) {
    %c0_i32 = arith.constant 0 : i32
    %c0_i32_0 = arith.constant 0 : i32
    %c0_i32_1 = arith.constant 0 : i32
    return %c0_i32, %c0_i32_0 : i32, i32
  }
  func.func @transform_5(%arg0: i32, %arg1: i32) -> (i32, i32, i32, i32) {
    %c0_i32 = arith.constant 0 : i32
    %c0_i32_0 = arith.constant 0 : i32
    %c0_i32_1 = arith.constant 0 : i32
    return %arg1, %arg0, %c0_i32, %c0_i32_0 : i32, i32, i32, i32
  }
}

</mosaic_0001>

<llo_original>
// kernel: spiking_ped_forward.1
$region0: #{spiking_ped_forward.1}
  #allocation0 [shape = 'u32[]', space=smem, size = 0x4, offset = 0x4, fixed_abs, tag = 'smem constant byte address 0x4 - core index']
  #allocation1 [shape = 'u32[72,128]{1,0:T(1,128)}', space=vmem, size = 0x9000, scoped, tag = 'internal scratch']
  #allocation2 [shape = 'f32[2,2,8,8,4]{4,3,2,1,0:T(8,128)}', space=vmem, size = 0x20000, scoped, tag = 'scratch operand']
  #allocation3 [shape = 'bf16[2,2,9,9,4]{4,3,2,1,0:T(8,128)(2,1)}', space=vmem, size = 0x24000, scoped, tag = 'scratch operand']
  #allocation4 [shape = 'f32[1]{0:T(128)S(6)}', space=smem, size = 0x200, scoped, tag = 'scoped memory for spiking_ped_forward.1']
  %s0 = inlined_call_operand.<no memory space> [shape: f32[1], index: 0, kind: input, shape index: {}]
  %s1 = inlined_call_operand.vmem [shape: f32[2,2,2,2,8,8,4], index: 1, kind: input, shape index: {}]
  %s2 = inlined_call_operand.vmem [shape: bf16[9,4,8], index: 2, kind: input, shape index: {}]
  %s3 = inlined_call_operand.vmem [shape: f32[4,8], index: 3, kind: input, shape index: {}]
  %s4 = inlined_call_operand.vmem [shape: f32[1,8], index: 4, kind: input, shape index: {}]
  %s5 = inlined_call_operand.vmem [shape: f32[2,2,8,64], index: 5, kind: output, shape index: {}]
  %s6 = sld [smem:[#allocation0]]
  $region57: #{spiking_ped_forward.1} parent=0
    _
  %s8 = ssub.s32 1, %s6
  %s9 = scalar_select 0, %s8, %s6
  %10 = sst [smem:[#allocation4]] %s0
  loop: start=0, step=1, limit=6
  $region2: #{spiking_ped_forward.1} parent=0 // loop_pre_header
    _
  $region3: #{spiking_ped_forward.1} parent=0 // loop_header
    %s12 = sphi 0, %s16
    %p13 = scmp.ge.s32.totalorder %s12, 6
    %s19 = sphi 0, %s31
    %s20 = sphi 0, %s27
    %s21 = sphi 0, %s19
    %s22 = sphi 0, %s20
    %s23 = sphi 0, %s21
    %s24 = sphi 0, %s22
    %s32 = sphi 0, %s32
    %s34 = sphi 0, %s32
    %s35 = sphi 0, %s34
    %s49 = sphi 0, %s35
    %s57 = sphi 0, %s59
    %s60 = sphi 0, %s57
    %s61 = sphi 0, %s60
    %s77 = sphi 0, %s61
    %s81 = sphi 0, %s81
    %s83 = sphi 0, %s81
    %s84 = sphi 0, %s83
    %s98 = sphi 0, %s84
    %s102 = sphi 0, %s102
    %s104 = sphi 0, %s102
    %s105 = sphi 0, %s104
    %s119 = sphi 0, %s105
    %s123 = sphi 0, %s123
    %s125 = sphi 0, %s123
    %s126 = sphi 0, %s125
    %s140 = sphi 0, %s126
    %s148 = sphi 0, %s150
    %s151 = sphi 0, %s148
    %s152 = sphi 0, %s151
    %s168 = sphi 0, %s152
  $region4: #{spiking_ped_forward.1} parent=0 // loop_header_branch
    %15 = sbr.rel (%p13) target = $region8
  $region5: #{spiking_ped_forward.1} parent=0 // loop_body
    %s17 = ssub.s32 %s12, 1
    %s18 = ssub.s32 %s12, 2
    %s25 = sadd.s32 1, %s20
    %p26 = scmp.ge.s32.totalorder %s25, 2
    %s27 = scalar_select %p26, 0, %s25
    %s28 = sadd.s32 1, %s19
    %s29 = scalar_select %p26, %s28, %s19
    %p30 = scmp.ge.s32.totalorder %s29, 2
    %s31 = scalar_select %p30, 0, %s29
    %s33 = sadd.s32 %s32, 1
    %p36 = scmp.eq.s32.totalorder %s12, 3
    %p37 = scmp.ne.s32.totalorder %s32, %s34
    %p38 = scmp.eq.s32.totalorder %s12, 0
    %p39 = por %p37, %p38
    %p40 = scmp.ne.s32.totalorder %s32, %s34
    %p41 = scmp.eq.s32.totalorder %s17, 3
    %p42 = por %p40, %p41
    %p43 = scmp.ne.s32.totalorder %s34, %s35
    %p44 = scmp.eq.s32.totalorder %s17, 0
    %p45 = por %p43, %p44
    %p46 = scmp.ne.s32.totalorder %s34, %s35
    %p47 = scmp.eq.s32.totalorder %s18, 3
    %p48 = por %p46, %p47
    %p50 = scmp.ne.s32.totalorder %s35, %s49
    %p51 = scmp.eq.s32.totalorder %s18, 0
    %p52 = por %p50, %p51
    %s53 = ssub.s32 %s20, %s27
    %s54 = ssub.s32 %s19, %s31
    %s55 = sor.u32 %s53, %s54
    %p56 = scmp.eq.s32.totalorder %s55, 0
    %s58 = sadd.s32 %s57, 1
    %s59 = scalar_select %p56, %s57, %s58
    %p62 = pneg %p56
    %p63 = scmp.eq.s32.totalorder %s12, 3
    %p64 = por %p62, %p63
    %p65 = scmp.ne.s32.totalorder %s57, %s60
    %p66 = scmp.eq.s32.totalorder %s12, 0
    %p67 = por %p65, %p66
    %p68 = scmp.ne.s32.totalorder %s57, %s60
    %p69 = scmp.eq.s32.totalorder %s17, 3
    %p70 = por %p68, %p69
    %p71 = scmp.ne.s32.totalorder %s60, %s61
    %p72 = scmp.eq.s32.totalorder %s17, 0
    %p73 = por %p71, %p72
    %p74 = scmp.ne.s32.totalorder %s60, %s61
    %p75 = scmp.eq.s32.totalorder %s18, 3
    %p76 = por %p74, %p75
    %p78 = scmp.ne.s32.totalorder %s61, %s77
    %p79 = scmp.eq.s32.totalorder %s18, 0
    %p80 = por %p78, %p79
    %s82 = sadd.s32 %s81, 1
    %p85 = scmp.eq.s32.totalorder %s12, 3
    %p86 = scmp.ne.s32.totalorder %s81, %s83
    %p87 = scmp.eq.s32.totalorder %s12, 0
    %p88 = por %p86, %p87
    %p89 = scmp.ne.s32.totalorder %s81, %s83
    %p90 = scmp.eq.s32.totalorder %s17, 3
    %p91 = por %p89, %p90
    %p92 = scmp.ne.s32.totalorder %s83, %s84
    %p93 = scmp.eq.s32.totalorder %s17, 0
    %p94 = por %p92, %p93
    %p95 = scmp.ne.s32.totalorder %s83, %s84
    %p96 = scmp.eq.s32.totalorder %s18, 3
    %p97 = por %p95, %p96
    %p99 = scmp.ne.s32.totalorder %s84, %s98
    %p100 = scmp.eq.s32.totalorder %s18, 0
    %p101 = por %p99, %p100
    %s103 = sadd.s32 %s102, 1
    %p106 = scmp.eq.s32.totalorder %s12, 3
    %p107 = scmp.ne.s32.totalorder %s102, %s104
    %p108 = scmp.eq.s32.totalorder %s12, 0
    %p109 = por %p107, %p108
    %p110 = scmp.ne.s32.totalorder %s102, %s104
    %p111 = scmp.eq.s32.totalorder %s17, 3
    %p112 = por %p110, %p111
    %p113 = scmp.ne.s32.totalorder %s104, %s105
    %p114 = scmp.eq.s32.totalorder %s17, 0
    %p115 = por %p113, %p114
    %p116 = scmp.ne.s32.totalorder %s104, %s105
    %p117 = scmp.eq.s32.totalorder %s18, 3
    %p118 = por %p116, %p117
    %p120 = scmp.ne.s32.totalorder %s105, %s119
    %p121 = scmp.eq.s32.totalorder %s18, 0
    %p122 = por %p120, %p121
    %s124 = sadd.s32 %s123, 1
    %p127 = scmp.eq.s32.totalorder %s12, 3
    %p128 = scmp.ne.s32.totalorder %s123, %s125
    %p129 = scmp.eq.s32.totalorder %s12, 0
    %p130 = por %p128, %p129
    %p131 = scmp.ne.s32.totalorder %s123, %s125
    %p132 = scmp.eq.s32.totalorder %s17, 3
    %p133 = por %p131, %p132
    %p134 = scmp.ne.s32.totalorder %s125, %s126
    %p135 = scmp.eq.s32.totalorder %s17, 0
    %p136 = por %p134, %p135
    %p137 = scmp.ne.s32.totalorder %s125, %s126
    %p138 = scmp.eq.s32.totalorder %s18, 3
    %p139 = por %p137, %p138
    %p141 = scmp.ne.s32.totalorder %s126, %s140
    %p142 = scmp.eq.s32.totalorder %s18, 0
    %p143 = por %p141, %p142
    %s144 = ssub.s32 %s20, %s27
    %s145 = ssub.s32 %s19, %s31
    %s146 = sor.u32 %s144, %s145
    %p147 = scmp.eq.s32.totalorder %s146, 0
    %s149 = sadd.s32 %s148, 1
    %s150 = scalar_select %p147, %s148, %s149
    %p153 = pneg %p147
    %p154 = scmp.eq.s32.totalorder %s12, 3
    %p155 = por %p153, %p154
    %p156 = scmp.ne.s32.totalorder %s148, %s151
    %p157 = scmp.eq.s32.totalorder %s12, 0
    %p158 = por %p156, %p157
    %p159 = scmp.ne.s32.totalorder %s148, %s151
    %p160 = scmp.eq.s32.totalorder %s17, 3
    %p161 = por %p159, %p160
    %p162 = scmp.ne.s32.totalorder %s151, %s152
    %p163 = scmp.eq.s32.totalorder %s17, 0
    %p164 = por %p162, %p163
    %p165 = scmp.ne.s32.totalorder %s151, %s152
    %p166 = scmp.eq.s32.totalorder %s18, 3
    %p167 = por %p165, %p166
    %p169 = scmp.ne.s32.totalorder %s152, %s168
    %p170 = scmp.eq.s32.totalorder %s18, 0
    %p171 = por %p169, %p170
    %p172 = scmp.le.s32.totalorder 1, %s12
    %p173 = scmp.lt.s32.totalorder %s12, 5
    %p174 = pnand %p172, %p173
    %p175 = pneg %p174
    // Predicated region
    $region9: #{spiking_ped_forward.1} parent=5 // pred_check
      _
    $region10: #{spiking_ped_forward.1} parent=5 // pred_check_branch
      %177 = sbr.rel (%p174) target = $region12
    $region11: #{spiking_ped_forward.1} parent=5 // pred_region
      %s178 = ssub.s32 %s12, 1
      // Predicated region
      $region13: #{spiking_ped_forward.1} parent=11 // pred_check
        %p179 = pneg %p45
      $region14: #{spiking_ped_forward.1} parent=11 // pred_check_branch
        %181 = sbr.rel (%p179) target = $region16
      $region15: #{spiking_ped_forward.1} parent=11 // pred_region
        _
      $region16: #{spiking_ped_forward.1} parent=11 // pred_fallthru
        _
      // Predicated region
      $region17: #{spiking_ped_forward.1} parent=11 // pred_check
        %p182 = pneg %p94
      $region18: #{spiking_ped_forward.1} parent=11 // pred_check_branch
        %184 = sbr.rel (%p182) target = $region20
      $region19: #{spiking_ped_forward.1} parent=11 // pred_region
        _
      $region20: #{spiking_ped_forward.1} parent=11 // pred_fallthru
        _
      // Predicated region
      $region21: #{spiking_ped_forward.1} parent=11 // pred_check
        %p185 = pneg %p115
      $region22: #{spiking_ped_forward.1} parent=11 // pred_check_branch
        %187 = sbr.rel (%p185) target = $region24
      $region23: #{spiking_ped_forward.1} parent=11 // pred_region
        _
      $region24: #{spiking_ped_forward.1} parent=11 // pred_fallthru
        _
      // Predicated region
      $region25: #{spiking_ped_forward.1} parent=11 // pred_check
        %p188 = pneg %p136
      $region26: #{spiking_ped_forward.1} parent=11 // pred_check_branch
        %190 = sbr.rel (%p188) target = $region28
      $region27: #{spiking_ped_forward.1} parent=11 // pred_region
        _
      $region28: #{spiking_ped_forward.1} parent=11 // pred_fallthru
        _
    $region12: #{spiking_ped_forward.1} parent=5 // pred_fallthru
      _
    %p191 = scmp.lt.s32.totalorder %s12, 4
    // Predicated region
    $region29: #{spiking_ped_forward.1} parent=5 // pred_check
      %p192 = pneg %p191
    $region30: #{spiking_ped_forward.1} parent=5 // pred_check_branch
      %194 = sbr.rel (%p192) target = $region32
    $region31: #{spiking_ped_forward.1} parent=5 // pred_region
      // Predicated region
      $region33: #{spiking_ped_forward.1} parent=31 // pred_check
        %p195 = pneg %p67
      $region34: #{spiking_ped_forward.1} parent=31 // pred_check_branch
        %197 = sbr.rel (%p195) target = $region36
      $region35: #{spiking_ped_forward.1} parent=31 // pred_region
        %p198 = scmp.lt.s32.totalorder %s20, 1
        %s199 = scalar_select %p198, %s20, 1
        %p200 = scmp.lt.s32.totalorder %s19, 1
        %s201 = scalar_select %p200, %s19, 1
        %s202 = smul.addr %s201, 32
        %s203 = smul.addr %s199, 64
        %s204 = sadd.s32 %s202, %s203
        %s205 = smul.addr %s204, 8
        %s206 = scalar_lea.vmem %s1, %s205
      $region36: #{spiking_ped_forward.1} parent=31 // pred_fallthru
        _
    $region32: #{spiking_ped_forward.1} parent=5 // pred_fallthru
      _
    %p207 = scmp.le.s32.totalorder 1, %s12
    %p208 = scmp.lt.s32.totalorder %s12, 5
    %p209 = pnand %p207, %p208
    %p210 = pneg %p209
    // Predicated region
    $region37: #{spiking_ped_forward.1} parent=5 // pred_check
      _
    $region38: #{spiking_ped_forward.1} parent=5 // pred_check_branch
      %212 = sbr.rel (%p209) target = $region40
    $region39: #{spiking_ped_forward.1} parent=5 // pred_region
      %s213 = ssub.s32 %s12, 1
      %p214 = pneg %p45
      %p215 = pneg %p42
      %p216 = scmp.lt.s32.totalorder %s22, 1
      %s217 = scalar_select %p216, %s22, 1
      %p218 = scmp.lt.s32.totalorder %s21, 1
      %s219 = scalar_select %p218, %s21, 1
      %s220 = smul.addr %s219, 32
      %s221 = smul.addr %s217, 64
      %s222 = sadd.s32 %s220, %s221
      %s223 = smul.addr %s222, 8
      %s224 = scalar_lea.vmem %s1, %s223
      %p225 = pneg %p73
      %p226 = pneg %p70
      %p227 = pneg %p94
      %p228 = pneg %p91
      %p229 = pneg %p115
      %p230 = pneg %p112
      %p231 = pneg %p136
      %p232 = pneg %p133
      %p233 = pneg %p164
      %p234 = pneg %p161
      %p235 = scmp.lt.s32.totalorder %s22, 1
      %s236 = scalar_select %p235, %s22, 1
      %p237 = scmp.lt.s32.totalorder %s21, 1
      %s238 = scalar_select %p237, %s21, 1
      %s239 = smul.addr %s236, 2
      %s240 = sadd.s32 %s238, %s239
      %s241 = smul.addr %s240, 8
      %s242 = scalar_lea.vmem %s5, %s241
      %p243 = scmp.lt.s32.totalorder %s22, 1
      %s244 = scalar_select %p243, %s22, 1
      %p245 = scmp.lt.s32.totalorder %s21, 1
      %s246 = scalar_select %p245, %s21, 1
      %s247 = smul.addr %s246, 32
      %s248 = smul.addr %s244, 64
      %s249 = sadd.s32 %s247, %s248
      %s250 = smul.addr %s249, 8
      %s251 = scalar_lea.vmem %s1, %s250
      %p252 = scmp.lt.s32.totalorder %s22, 1
      %s253 = scalar_select %p252, %s22, 1
      %p254 = scmp.lt.s32.totalorder %s21, 1
      %s255 = scalar_select %p254, %s21, 1
      %s256 = smul.addr %s253, 2
      %s257 = sadd.s32 %s255, %s256
      %s258 = smul.addr %s257, 8
      %s259 = scalar_lea.vmem %s5, %s258
      %p261 = scmp.eq.s32.totalorder %s22, 0
      // Predicated region
      $region41: #{spiking_ped_forward.1} parent=39 // pred_check
        %p262 = pneg %p261
      $region42: #{spiking_ped_forward.1} parent=39 // pred_check_branch
        %264 = sbr.rel (%p262) target = $region44
      $region43: #{spiking_ped_forward.1} parent=39 // pred_region
        %vm265 = vcmask 31744
        %266 = vst.msk [vmem:[#allocation2] sm:$0xff] %vm265, 0.0
        %267 = vst.msk [vmem:[#allocation2 + $0x8] sm:$0xff] %vm265, 0.0
        %268 = vst.msk [vmem:[#allocation2 + $0x10] sm:$0xff] %vm265, 0.0
        %269 = vst.msk [vmem:[#allocation2 + $0x18] sm:$0xff] %vm265, 0.0
        %270 = vst.msk [vmem:[#allocation2 + $0x20] sm:$0xff] %vm265, 0.0
        %271 = vst.msk [vmem:[#allocation2 + $0x28] sm:$0xff] %vm265, 0.0
        %272 = vst.msk [vmem:[#allocation2 + $0x30] sm:$0xff] %vm265, 0.0
        %273 = vst.msk [vmem:[#allocation2 + $0x38] sm:$0xff] %vm265, 0.0
        %274 = vst.msk [vmem:[#allocation2 + $0x40] sm:$0xff] %vm265, 0.0
        %275 = vst.msk [vmem:[#allocation2 + $0x48] sm:$0xff] %vm265, 0.0
        %276 = vst.msk [vmem:[#allocation2 + $0x50] sm:$0xff] %vm265, 0.0
        %277 = vst.msk [vmem:[#allocation2 + $0x58] sm:$0xff] %vm265, 0.0
        %278 = vst.msk [vmem:[#allocation2 + $0x60] sm:$0xff] %vm265, 0.0
        %279 = vst.msk [vmem:[#allocation2 + $0x68] sm:$0xff] %vm265, 0.0
        %280 = vst.msk [vmem:[#allocation2 + $0x70] sm:$0xff] %vm265, 0.0
        %281 = vst.msk [vmem:[#allocation2 + $0x78] sm:$0xff] %vm265, 0.0
        %282 = vst.msk [vmem:[#allocation2 + $0x80] sm:$0xff] %vm265, 0.0
        %283 = vst.msk [vmem:[#allocation2 + $0x88] sm:$0xff] %vm265, 0.0
        %284 = vst.msk [vmem:[#allocation2 + $0x90] sm:$0xff] %vm265, 0.0
        %285 = vst.msk [vmem:[#allocation2 + $0x98] sm:$0xff] %vm265, 0.0
        %286 = vst.msk [vmem:[#allocation2 + $0xa0] sm:$0xff] %vm265, 0.0
        %287 = vst.msk [vmem:[#allocation2 + $0xa8] sm:$0xff] %vm265, 0.0
        %288 = vst.msk [vmem:[#allocation2 + $0xb0] sm:$0xff] %vm265, 0.0
        %289 = vst.msk [vmem:[#allocation2 + $0xb8] sm:$0xff] %vm265, 0.0
        %290 = vst.msk [vmem:[#allocation2 + $0xc0] sm:$0xff] %vm265, 0.0
        %291 = vst.msk [vmem:[#allocation2 + $0xc8] sm:$0xff] %vm265, 0.0
        %292 = vst.msk [vmem:[#allocation2 + $0xd0] sm:$0xff] %vm265, 0.0
        %293 = vst.msk [vmem:[#allocation2 + $0xd8] sm:$0xff] %vm265, 0.0
        %294 = vst.msk [vmem:[#allocation2 + $0xe0] sm:$0xff] %vm265, 0.0
        %295 = vst.msk [vmem:[#allocation2 + $0xe8] sm:$0xff] %vm265, 0.0
        %296 = vst.msk [vmem:[#allocation2 + $0xf0] sm:$0xff] %vm265, 0.0
        %297 = vst.msk [vmem:[#allocation2 + $0xf8] sm:$0xff] %vm265, 0.0
        %vm298 = vcmask 27648
        %299 = vst.msk [vmem:[#allocation3] sm:$0xf] %vm298, 0
        %vm300 = vcmask 24576
        %vm301 = vsmask.f32 256
        %vm302 = vmand %vm300, %vm301
        %v303 = vld [vmem:[#allocation3 + $0x4] sm:$0x1]
        %v304 = vsel %vm302, 0, %v303
        %305 = vst [vmem:[#allocation3 + $0x4] sm:$0x1] %v304
        %306 = vst.msk [vmem:[#allocation3 + $0x8] sm:$0xf] %vm298, 0
        %v307 = vld [vmem:[#allocation3 + $0xc] sm:$0x1]
        %v308 = vsel %vm302, 0, %v307
        %309 = vst [vmem:[#allocation3 + $0xc] sm:$0x1] %v308
        %310 = vst.msk [vmem:[#allocation3 + $0x10] sm:$0xf] %vm298, 0
        %v311 = vld [vmem:[#allocation3 + $0x14] sm:$0x1]
        %v312 = vsel %vm302, 0, %v311
        %313 = vst [vmem:[#allocation3 + $0x14] sm:$0x1] %v312
        %314 = vst.msk [vmem:[#allocation3 + $0x18] sm:$0xf] %vm298, 0
        %v315 = vld [vmem:[#allocation3 + $0x1c] sm:$0x1]
        %v316 = vsel %vm302, 0, %v315
        %317 = vst [vmem:[#allocation3 + $0x1c] sm:$0x1] %v316
        %318 = vst.msk [vmem:[#allocation3 + $0x20] sm:$0xf] %vm298, 0
        %v319 = vld [vmem:[#allocation3 + $0x24] sm:$0x1]
        %v320 = vsel %vm302, 0, %v319
        %321 = vst [vmem:[#allocation3 + $0x24] sm:$0x1] %v320
        %322 = vst.msk [vmem:[#allocation3 + $0x28] sm:$0xf] %vm298, 0
        %v323 = vld [vmem:[#allocation3 + $0x2c] sm:$0x1]
        %v324 = vsel %vm302, 0, %v323
        %325 = vst [vmem:[#allocation3 + $0x2c] sm:$0x1] %v324
        %326 = vst.msk [vmem:[#allocation3 + $0x30] sm:$0xf] %vm298, 0
        %v327 = vld [vmem:[#allocation3 + $0x34] sm:$0x1]
        %v328 = vsel %vm302, 0, %v327
        %329 = vst [vmem:[#allocation3 + $0x34] sm:$0x1] %v328
        %330 = vst.msk [vmem:[#allocation3 + $0x38] sm:$0xf] %vm298, 0
        %v331 = vld [vmem:[#allocation3 + $0x3c] sm:$0x1]
        %v332 = vsel %vm302, 0, %v331
        %333 = vst [vmem:[#allocation3 + $0x3c] sm:$0x1] %v332
        %334 = vst.msk [vmem:[#allocation3 + $0x40] sm:$0xf] %vm298, 0
        %v335 = vld [vmem:[#allocation3 + $0x44] sm:$0x1]
        %v336 = vsel %vm302, 0, %v335
        %337 = vst [vmem:[#allocation3 + $0x44] sm:$0x1] %v336
        %338 = vst.msk [vmem:[#allocation3 + $0x48] sm:$0xf] %vm298, 0
        %v339 = vld [vmem:[#allocation3 + $0x4c] sm:$0x1]
        %v340 = vsel %vm302, 0, %v339
        %341 = vst [vmem:[#allocation3 + $0x4c] sm:$0x1] %v340
        %342 = vst.msk [vmem:[#allocation3 + $0x50] sm:$0xf] %vm298, 0
        %v343 = vld [vmem:[#allocation3 + $0x54] sm:$0x1]
        %v344 = vsel %vm302, 0, %v343
        %345 = vst [vmem:[#allocation3 + $0x54] sm:$0x1] %v344
        %346 = vst.msk [vmem:[#allocation3 + $0x58] sm:$0xf] %vm298, 0
        %v347 = vld [vmem:[#allocation3 + $0x5c] sm:$0x1]
        %v348 = vsel %vm302, 0, %v347
        %349 = vst [vmem:[#allocation3 + $0x5c] sm:$0x1] %v348
        %350 = vst.msk [vmem:[#allocation3 + $0x60] sm:$0xf] %vm298, 0
        %v351 = vld [vmem:[#allocation3 + $0x64] sm:$0x1]
        %v352 = vsel %vm302, 0, %v351
        %353 = vst [vmem:[#allocation3 + $0x64] sm:$0x1] %v352
        %354 = vst.msk [vmem:[#allocation3 + $0x68] sm:$0xf] %vm298, 0
        %v355 = vld [vmem:[#allocation3 + $0x6c] sm:$0x1]
        %v356 = vsel %vm302, 0, %v355
        %357 = vst [vmem:[#allocation3 + $0x6c] sm:$0x1] %v356
        %358 = vst.msk [vmem:[#allocation3 + $0x70] sm:$0xf] %vm298, 0
        %v359 = vld [vmem:[#allocation3 + $0x74] sm:$0x1]
        %v360 = vsel %vm302, 0, %v359
        %361 = vst [vmem:[#allocation3 + $0x74] sm:$0x1] %v360
        %362 = vst.msk [vmem:[#allocation3 + $0x78] sm:$0xf] %vm298, 0
        %v363 = vld [vmem:[#allocation3 + $0x7c] sm:$0x1]
        %v364 = vsel %vm302, 0, %v363
        %365 = vst [vmem:[#allocation3 + $0x7c] sm:$0x1] %v364
        %366 = vst.msk [vmem:[#allocation3 + $0x80] sm:$0xf] %vm298, 0
        %v367 = vld [vmem:[#allocation3 + $0x84] sm:$0x1]
        %v368 = vsel %vm302, 0, %v367
        %369 = vst [vmem:[#allocation3 + $0x84] sm:$0x1] %v368
        %370 = vst.msk [vmem:[#allocation3 + $0x88] sm:$0xf] %vm298, 0
        %v371 = vld [vmem:[#allocation3 + $0x8c] sm:$0x1]
        %v372 = vsel %vm302, 0, %v371
        %373 = vst [vmem:[#allocation3 + $0x8c] sm:$0x1] %v372
        %374 = vst.msk [vmem:[#allocation3 + $0x90] sm:$0xf] %vm298, 0
        %v375 = vld [vmem:[#allocation3 + $0x94] sm:$0x1]
        %v376 = vsel %vm302, 0, %v375
        %377 = vst [vmem:[#allocation3 + $0x94] sm:$0x1] %v376
        %378 = vst.msk [vmem:[#allocation3 + $0x98] sm:$0xf] %vm298, 0
        %v379 = vld [vmem:[#allocation3 + $0x9c] sm:$0x1]
        %v380 = vsel %vm302, 0, %v379
        %381 = vst [vmem:[#allocation3 + $0x9c] sm:$0x1] %v380
        %382 = vst.msk [vmem:[#allocation3 + $0xa0] sm:$0xf] %vm298, 0
        %v383 = vld [vmem:[#allocation3 + $0xa4] sm:$0x1]
        %v384 = vsel %vm302, 0, %v383
        %385 = vst [vmem:[#allocation3 + $0xa4] sm:$0x1] %v384
        %386 = vst.msk [vmem:[#allocation3 + $0xa8] sm:$0xf] %vm298, 0
        %v387 = vld [vmem:[#allocation3 + $0xac] sm:$0x1]
        %v388 = vsel %vm302, 0, %v387
        %389 = vst [vmem:[#allocation3 + $0xac] sm:$0x1] %v388
        %390 = vst.msk [vmem:[#allocation3 + $0xb0] sm:$0xf] %vm298, 0
        %v391 = vld [vmem:[#allocation3 + $0xb4] sm:$0x1]
        %v392 = vsel %vm302, 0, %v391
        %393 = vst [vmem:[#allocation3 + $0xb4] sm:$0x1] %v392
        %394 = vst.msk [vmem:[#allocation3 + $0xb8] sm:$0xf] %vm298, 0
        %v395 = vld [vmem:[#allocation3 + $0xbc] sm:$0x1]
        %v396 = vsel %vm302, 0, %v395
        %397 = vst [vmem:[#allocation3 + $0xbc] sm:$0x1] %v396
        %398 = vst.msk [vmem:[#allocation3 + $0xc0] sm:$0xf] %vm298, 0
        %v399 = vld [vmem:[#allocation3 + $0xc4] sm:$0x1]
        %v400 = vsel %vm302, 0, %v399
        %401 = vst [vmem:[#allocation3 + $0xc4] sm:$0x1] %v400
        %402 = vst.msk [vmem:[#allocation3 + $0xc8] sm:$0xf] %vm298, 0
        %v403 = vld [vmem:[#allocation3 + $0xcc] sm:$0x1]
        %v404 = vsel %vm302, 0, %v403
        %405 = vst [vmem:[#allocation3 + $0xcc] sm:$0x1] %v404
        %406 = vst.msk [vmem:[#allocation3 + $0xd0] sm:$0xf] %vm298, 0
        %v407 = vld [vmem:[#allocation3 + $0xd4] sm:$0x1]
        %v408 = vsel %vm302, 0, %v407
        %409 = vst [vmem:[#allocation3 + $0xd4] sm:$0x1] %v408
        %410 = vst.msk [vmem:[#allocation3 + $0xd8] sm:$0xf] %vm298, 0
        %v411 = vld [vmem:[#allocation3 + $0xdc] sm:$0x1]
        %v412 = vsel %vm302, 0, %v411
        %413 = vst [vmem:[#allocation3 + $0xdc] sm:$0x1] %v412
        %414 = vst.msk [vmem:[#allocation3 + $0xe0] sm:$0xf] %vm298, 0
        %v415 = vld [vmem:[#allocation3 + $0xe4] sm:$0x1]
        %v416 = vsel %vm302, 0, %v415
        %417 = vst [vmem:[#allocation3 + $0xe4] sm:$0x1] %v416
        %418 = vst.msk [vmem:[#allocation3 + $0xe8] sm:$0xf] %vm298, 0
        %v419 = vld [vmem:[#allocation3 + $0xec] sm:$0x1]
        %v420 = vsel %vm302, 0, %v419
        %421 = vst [vmem:[#allocation3 + $0xec] sm:$0x1] %v420
        %422 = vst.msk [vmem:[#allocation3 + $0xf0] sm:$0xf] %vm298, 0
        %v423 = vld [vmem:[#allocation3 + $0xf4] sm:$0x1]
        %v424 = vsel %vm302, 0, %v423
        %425 = vst [vmem:[#allocation3 + $0xf4] sm:$0x1] %v424
        %426 = vst.msk [vmem:[#allocation3 + $0xf8] sm:$0xf] %vm298, 0
        %v427 = vld [vmem:[#allocation3 + $0xfc] sm:$0x1]
        %v428 = vsel %vm302, 0, %v427
        %429 = vst [vmem:[#allocation3 + $0xfc] sm:$0x1] %v428
        %430 = vst.msk [vmem:[#allocation3 + $0x100] sm:$0xf] %vm298, 0
        %v431 = vld [vmem:[#allocation3 + $0x104] sm:$0x1]
        %v432 = vsel %vm302, 0, %v431
        %433 = vst [vmem:[#allocation3 + $0x104] sm:$0x1] %v432
        %434 = vst.msk [vmem:[#allocation3 + $0x108] sm:$0xf] %vm298, 0
        %v435 = vld [vmem:[#allocation3 + $0x10c] sm:$0x1]
        %v436 = vsel %vm302, 0, %v435
        %437 = vst [vmem:[#allocation3 + $0x10c] sm:$0x1] %v436
        %438 = vst.msk [vmem:[#allocation3 + $0x110] sm:$0xf] %vm298, 0
        %v439 = vld [vmem:[#allocation3 + $0x114] sm:$0x1]
        %v440 = vsel %vm302, 0, %v439
        %441 = vst [vmem:[#allocation3 + $0x114] sm:$0x1] %v440
        %442 = vst.msk [vmem:[#allocation3 + $0x118] sm:$0xf] %vm298, 0
        %v443 = vld [vmem:[#allocation3 + $0x11c] sm:$0x1]
        %v444 = vsel %vm302, 0, %v443
        %445 = vst [vmem:[#allocation3 + $0x11c] sm:$0x1] %v444
      $region44: #{spiking_ped_forward.1} parent=39 // pred_fallthru
        _
      %s446 = sld [smem:[#allocation4]]
      %v447 = vld [vmem:[%s251] sm:$0xff]
      %v448 = vld [vmem:[%s251 + $0x8] sm:$0xff]
      %v449 = vld [vmem:[%s251 + $0x10] sm:$0xff]
      %v450 = vld [vmem:[%s251 + $0x18] sm:$0xff]
      %v451 = vld [vmem:[%s251 + $0x20] sm:$0xff]
      %v452 = vld [vmem:[%s251 + $0x28] sm:$0xff]
      %v453 = vld [vmem:[%s251 + $0x30] sm:$0xff]
      %v454 = vld [vmem:[%s251 + $0x38] sm:$0xff]
      %v455 = vld [vmem:[%s251 + $0x40] sm:$0xff]
      %v456 = vld [vmem:[%s251 + $0x48] sm:$0xff]
      %v457 = vld [vmem:[%s251 + $0x50] sm:$0xff]
      %v458 = vld [vmem:[%s251 + $0x58] sm:$0xff]
      %v459 = vld [vmem:[%s251 + $0x60] sm:$0xff]
      %v460 = vld [vmem:[%s251 + $0x68] sm:$0xff]
      %v461 = vld [vmem:[%s251 + $0x70] sm:$0xff]
      %v462 = vld [vmem:[%s251 + $0x78] sm:$0xff]
      %v463 = vld [vmem:[%s251 + $0x80] sm:$0xff]
      %v464 = vld [vmem:[%s251 + $0x88] sm:$0xff]
      %v465 = vld [vmem:[%s251 + $0x90] sm:$0xff]
      %v466 = vld [vmem:[%s251 + $0x98] sm:$0xff]
      %v467 = vld [vmem:[%s251 + $0xa0] sm:$0xff]
      %v468 = vld [vmem:[%s251 + $0xa8] sm:$0xff]
      %v469 = vld [vmem:[%s251 + $0xb0] sm:$0xff]
      %v470 = vld [vmem:[%s251 + $0xb8] sm:$0xff]
      %v471 = vld [vmem:[%s251 + $0xc0] sm:$0xff]
      %v472 = vld [vmem:[%s251 + $0xc8] sm:$0xff]
      %v473 = vld [vmem:[%s251 + $0xd0] sm:$0xff]
      %v474 = vld [vmem:[%s251 + $0xd8] sm:$0xff]
      %v475 = vld [vmem:[%s251 + $0xe0] sm:$0xff]
      %v476 = vld [vmem:[%s251 + $0xe8] sm:$0xff]
      %v477 = vld [vmem:[%s251 + $0xf0] sm:$0xff]
      %v478 = vld [vmem:[%s251 + $0xf8] sm:$0xff]
      %v479 = vld [vmem:[#allocation2] sm:$0xff]
      %v480 = vld [vmem:[#allocation2 + $0x8] sm:$0xff]
      %v481 = vld [vmem:[#allocation2 + $0x10] sm:$0xff]
      %v482 = vld [vmem:[#allocation2 + $0x18] sm:$0xff]
      %v483 = vld [vmem:[#allocation2 + $0x20] sm:$0xff]
      %v484 = vld [vmem:[#allocation2 + $0x28] sm:$0xff]
      %v485 = vld [vmem:[#allocation2 + $0x30] sm:$0xff]
      %v486 = vld [vmem:[#allocation2 + $0x38] sm:$0xff]
      %v487 = vld [vmem:[#allocation2 + $0x40] sm:$0xff]
      %v488 = vld [vmem:[#allocation2 + $0x48] sm:$0xff]
      %v489 = vld [vmem:[#allocation2 + $0x50] sm:$0xff]
      %v490 = vld [vmem:[#allocation2 + $0x58] sm:$0xff]
      %v491 = vld [vmem:[#allocation2 + $0x60] sm:$0xff]
      %v492 = vld [vmem:[#allocation2 + $0x68] sm:$0xff]
      %v493 = vld [vmem:[#allocation2 + $0x70] sm:$0xff]
      %v494 = vld [vmem:[#allocation2 + $0x78] sm:$0xff]
      %v495 = vld [vmem:[#allocation2 + $0x80] sm:$0xff]
      %v496 = vld [vmem:[#allocation2 + $0x88] sm:$0xff]
      %v497 = vld [vmem:[#allocation2 + $0x90] sm:$0xff]
      %v498 = vld [vmem:[#allocation2 + $0x98] sm:$0xff]
      %v499 = vld [vmem:[#allocation2 + $0xa0] sm:$0xff]
      %v500 = vld [vmem:[#allocation2 + $0xa8] sm:$0xff]
      %v501 = vld [vmem:[#allocation2 + $0xb0] sm:$0xff]
      %v502 = vld [vmem:[#allocation2 + $0xb8] sm:$0xff]
      %v503 = vld [vmem:[#allocation2 + $0xc0] sm:$0xff]
      %v504 = vld [vmem:[#allocation2 + $0xc8] sm:$0xff]
      %v505 = vld [vmem:[#allocation2 + $0xd0] sm:$0xff]
      %v506 = vld [vmem:[#allocation2 + $0xd8] sm:$0xff]
      %v507 = vld [vmem:[#allocation2 + $0xe0] sm:$0xff]
      %v508 = vld [vmem:[#allocation2 + $0xe8] sm:$0xff]
      %v509 = vld [vmem:[#allocation2 + $0xf0] sm:$0xff]
      %v510 = vld [vmem:[#allocation2 + $0xf8] sm:$0xff]
      %v511 = vsub.f32 %v447, %v479
      %v512 = vsub.f32 %v448, %v480
      %v513 = vsub.f32 %v449, %v481
      %v514 = vsub.f32 %v450, %v482
      %v515 = vsub.f32 %v451, %v483
      %v516 = vsub.f32 %v452, %v484
      %v517 = vsub.f32 %v453, %v485
      %v518 = vsub.f32 %v454, %v486
      %v519 = vsub.f32 %v455, %v487
      %v520 = vsub.f32 %v456, %v488
      %v521 = vsub.f32 %v457, %v489
      %v522 = vsub.f32 %v458, %v490
      %v523 = vsub.f32 %v459, %v491
      %v524 = vsub.f32 %v460, %v492
      %v525 = vsub.f32 %v461, %v493
      %v526 = vsub.f32 %v462, %v494
      %v527 = vsub.f32 %v463, %v495
      %v528 = vsub.f32 %v464, %v496
      %v529 = vsub.f32 %v465, %v497
      %v530 = vsub.f32 %v466, %v498
      %v531 = vsub.f32 %v467, %v499
      %v532 = vsub.f32 %v468, %v500
      %v533 = vsub.f32 %v469, %v501
      %v534 = vsub.f32 %v470, %v502
      %v535 = vsub.f32 %v471, %v503
      %v536 = vsub.f32 %v472, %v504
      %v537 = vsub.f32 %v473, %v505
      %v538 = vsub.f32 %v474, %v506
      %v539 = vsub.f32 %v475, %v507
      %v540 = vsub.f32 %v476, %v508
      %v541 = vsub.f32 %v477, %v509
      %v542 = vsub.f32 %v478, %v510
      %v543 = vstv %s446
      %v544 = vmul.f32 %v511, %v543
      %v545 = vmul.f32 %v512, %v543
      %v546 = vmul.f32 %v513, %v543
      %v547 = vmul.f32 %v514, %v543
      %v548 = vmul.f32 %v515, %v543
      %v549 = vmul.f32 %v516, %v543
      %v550 = vmul.f32 %v517, %v543
      %v551 = vmul.f32 %v518, %v543
      %v552 = vmul.f32 %v519, %v543
      %v553 = vmul.f32 %v520, %v543
      %v554 = vmul.f32 %v521, %v543
      %v555 = vmul.f32 %v522, %v543
      %v556 = vmul.f32 %v523, %v543
      %v557 = vmul.f32 %v524, %v543
      %v558 = vmul.f32 %v525, %v543
      %v559 = vmul.f32 %v526, %v543
      %v560 = vmul.f32 %v527, %v543
      %v561 = vmul.f32 %v528, %v543
      %v562 = vmul.f32 %v529, %v543
      %v563 = vmul.f32 %v530, %v543
      %v564 = vmul.f32 %v531, %v543
      %v565 = vmul.f32 %v532, %v543
      %v566 = vmul.f32 %v533, %v543
      %v567 = vmul.f32 %v534, %v543
      %v568 = vmul.f32 %v535, %v543
      %v569 = vmul.f32 %v536, %v543
      %v570 = vmul.f32 %v537, %v543
      %v571 = vmul.f32 %v538, %v543
      %v572 = vmul.f32 %v539, %v543
      %v573 = vmul.f32 %v540, %v543
      %v574 = vmul.f32 %v541, %v543
      %v575 = vmul.f32 %v542, %v543
      %v576 = vadd.f32 %v479, %v544
      %v577 = vadd.f32 %v480, %v545
      %v578 = vadd.f32 %v481, %v546
      %v579 = vadd.f32 %v482, %v547
      %v580 = vadd.f32 %v483, %v548
      %v581 = vadd.f32 %v484, %v549
      %v582 = vadd.f32 %v485, %v550
      %v583 = vadd.f32 %v486, %v551
      %v584 = vadd.f32 %v487, %v552
      %v585 = vadd.f32 %v488, %v553
      %v586 = vadd.f32 %v489, %v554
      %v587 = vadd.f32 %v490, %v555
      %v588 = vadd.f32 %v491, %v556
      %v589 = vadd.f32 %v492, %v557
      %v590 = vadd.f32 %v493, %v558
      %v591 = vadd.f32 %v494, %v559
      %v592 = vadd.f32 %v495, %v560
      %v593 = vadd.f32 %v496, %v561
      %v594 = vadd.f32 %v497, %v562
      %v595 = vadd.f32 %v498, %v563
      %v596 = vadd.f32 %v499, %v564
      %v597 = vadd.f32 %v500, %v565
      %v598 = vadd.f32 %v501, %v566
      %v599 = vadd.f32 %v502, %v567
      %v600 = vadd.f32 %v503, %v568
      %v601 = vadd.f32 %v504, %v569
      %v602 = vadd.f32 %v505, %v570
      %v603 = vadd.f32 %v506, %v571
      %v604 = vadd.f32 %v507, %v572
      %v605 = vadd.f32 %v508, %v573
      %v606 = vadd.f32 %v509, %v574
      %v607 = vadd.f32 %v510, %v575
      %vm608 = vcmp.ge.f32.partialorder %v576, 1.0
      %vm609 = vcmp.ge.f32.partialorder %v577, 1.0
      %vm610 = vcmp.ge.f32.partialorder %v578, 1.0
      %vm611 = vcmp.ge.f32.partialorder %v579, 1.0
      %vm612 = vcmp.ge.f32.partialorder %v580, 1.0
      %vm613 = vcmp.ge.f32.partialorder %v581, 1.0
      %vm614 = vcmp.ge.f32.partialorder %v582, 1.0
      %vm615 = vcmp.ge.f32.partialorder %v583, 1.0
      %vm616 = vcmp.ge.f32.partialorder %v584, 1.0
      %vm617 = vcmp.ge.f32.partialorder %v585, 1.0
      %vm618 = vcmp.ge.f32.partialorder %v586, 1.0
      %vm619 = vcmp.ge.f32.partialorder %v587, 1.0
      %vm620 = vcmp.ge.f32.partialorder %v588, 1.0
      %vm621 = vcmp.ge.f32.partialorder %v589, 1.0
      %vm622 = vcmp.ge.f32.partialorder %v590, 1.0
      %vm623 = vcmp.ge.f32.partialorder %v591, 1.0
      %vm624 = vcmp.ge.f32.partialorder %v592, 1.0
      %vm625 = vcmp.ge.f32.partialorder %v593, 1.0
      %vm626 = vcmp.ge.f32.partialorder %v594, 1.0
      %vm627 = vcmp.ge.f32.partialorder %v595, 1.0
      %vm628 = vcmp.ge.f32.partialorder %v596, 1.0
      %vm629 = vcmp.ge.f32.partialorder %v597, 1.0
      %vm630 = vcmp.ge.f32.partialorder %v598, 1.0
      %vm631 = vcmp.ge.f32.partialorder %v599, 1.0
      %vm632 = vcmp.ge.f32.partialorder %v600, 1.0
      %vm633 = vcmp.ge.f32.partialorder %v601, 1.0
      %vm634 = vcmp.ge.f32.partialorder %v602, 1.0
      %vm635 = vcmp.ge.f32.partialorder %v603, 1.0
      %vm636 = vcmp.ge.f32.partialorder %v604, 1.0
      %vm637 = vcmp.ge.f32.partialorder %v605, 1.0
      %vm638 = vcmp.ge.f32.partialorder %v606, 1.0
      %vm639 = vcmp.ge.f32.partialorder %v607, 1.0
      %v640 = vsel %vm608, 1, 0
      %v641 = vsel %vm609, 1, 0
      %v642 = vsel %vm610, 1, 0
      %v643 = vsel %vm611, 1, 0
      %v644 = vsel %vm612, 1, 0
      %v645 = vsel %vm613, 1, 0
      %v646 = vsel %vm614, 1, 0
      %v647 = vsel %vm615, 1, 0
      %v648 = vsel %vm616, 1, 0
      %v649 = vsel %vm617, 1, 0
      %v650 = vsel %vm618, 1, 0
      %v651 = vsel %vm619, 1, 0
      %v652 = vsel %vm620, 1, 0
      %v653 = vsel %vm621, 1, 0
      %v654 = vsel %vm622, 1, 0
      %v655 = vsel %vm623, 1, 0
      %v656 = vsel %vm624, 1, 0
      %v657 = vsel %vm625, 1, 0
      %v658 = vsel %vm626, 1, 0
      %v659 = vsel %vm627, 1, 0
      %v660 = vsel %vm628, 1, 0
      %v661 = vsel %vm629, 1, 0
      %v662 = vsel %vm630, 1, 0
      %v663 = vsel %vm631, 1, 0
      %v664 = vsel %vm632, 1, 0
      %v665 = vsel %vm633, 1, 0
      %v666 = vsel %vm634, 1, 0
      %v667 = vsel %vm635, 1, 0
      %v668 = vsel %vm636, 1, 0
      %v669 = vsel %vm637, 1, 0
      %v670 = vsel %vm638, 1, 0
      %v671 = vsel %vm639, 1, 0
      %v672 = vcvt.s32.f32 %v640
      %v673 = vcvt.s32.f32 %v641
      %v674 = vcvt.s32.f32 %v642
      %v675 = vcvt.s32.f32 %v643
      %v676 = vcvt.s32.f32 %v644
      %v677 = vcvt.s32.f32 %v645
      %v678 = vcvt.s32.f32 %v646
      %v679 = vcvt.s32.f32 %v647
      %v680 = vcvt.s32.f32 %v648
      %v681 = vcvt.s32.f32 %v649
      %v682 = vcvt.s32.f32 %v650
      %v683 = vcvt.s32.f32 %v651
      %v684 = vcvt.s32.f32 %v652
      %v685 = vcvt.s32.f32 %v653
      %v686 = vcvt.s32.f32 %v654
      %v687 = vcvt.s32.f32 %v655
      %v688 = vcvt.s32.f32 %v656
      %v689 = vcvt.s32.f32 %v657
      %v690 = vcvt.s32.f32 %v658
      %v691 = vcvt.s32.f32 %v659
      %v692 = vcvt.s32.f32 %v660
      %v693 = vcvt.s32.f32 %v661
      %v694 = vcvt.s32.f32 %v662
      %v695 = vcvt.s32.f32 %v663
      %v696 = vcvt.s32.f32 %v664
      %v697 = vcvt.s32.f32 %v665
      %v698 = vcvt.s32.f32 %v666
      %v699 = vcvt.s32.f32 %v667
      %v700 = vcvt.s32.f32 %v668
      %v701 = vcvt.s32.f32 %v669
      %v702 = vcvt.s32.f32 %v670
      %v703 = vcvt.s32.f32 %v671
      %v704 = vsub.f32 1.0, %v672
      %v705 = vsub.f32 1.0, %v673
      %v706 = vsub.f32 1.0, %v674
      %v707 = vsub.f32 1.0, %v675
      %v708 = vsub.f32 1.0, %v676
      %v709 = vsub.f32 1.0, %v677
      %v710 = vsub.f32 1.0, %v678
      %v711 = vsub.f32 1.0, %v679
      %v712 = vsub.f32 1.0, %v680
      %v713 = vsub.f32 1.0, %v681
      %v714 = vsub.f32 1.0, %v682
      %v715 = vsub.f32 1.0, %v683
      %v716 = vsub.f32 1.0, %v684
      %v717 = vsub.f32 1.0, %v685
      %v718 = vsub.f32 1.0, %v686
      %v719 = vsub.f32 1.0, %v687
      %v720 = vsub.f32 1.0, %v688
      %v721 = vsub.f32 1.0, %v689
      %v722 = vsub.f32 1.0, %v690
      %v723 = vsub.f32 1.0, %v691
      %v724 = vsub.f32 1.0, %v692
      %v725 = vsub.f32 1.0, %v693
      %v726 = vsub.f32 1.0, %v694
      %v727 = vsub.f32 1.0, %v695
      %v728 = vsub.f32 1.0, %v696
      %v729 = vsub.f32 1.0, %v697
      %v730 = vsub.f32 1.0, %v698
      %v731 = vsub.f32 1.0, %v699
      %v732 = vsub.f32 1.0, %v700
      %v733 = vsub.f32 1.0, %v701
      %v734 = vsub.f32 1.0, %v702
      %v735 = vsub.f32 1.0, %v703
      %v736 = vmul.f32 %v576, %v704
      %v737 = vmul.f32 %v577, %v705
      %v738 = vmul.f32 %v578, %v706
      %v739 = vmul.f32 %v579, %v707
      %v740 = vmul.f32 %v580, %v708
      %v741 = vmul.f32 %v581, %v709
      %v742 = vmul.f32 %v582, %v710
      %v743 = vmul.f32 %v583, %v711
      %v744 = vmul.f32 %v584, %v712
      %v745 = vmul.f32 %v585, %v713
      %v746 = vmul.f32 %v586, %v714
      %v747 = vmul.f32 %v587, %v715
      %v748 = vmul.f32 %v588, %v716
      %v749 = vmul.f32 %v589, %v717
      %v750 = vmul.f32 %v590, %v718
      %v751 = vmul.f32 %v591, %v719
      %v752 = vmul.f32 %v592, %v720
      %v753 = vmul.f32 %v593, %v721
      %v754 = vmul.f32 %v594, %v722
      %v755 = vmul.f32 %v595, %v723
      %v756 = vmul.f32 %v596, %v724
      %v757 = vmul.f32 %v597, %v725
      %v758 = vmul.f32 %v598, %v726
      %v759 = vmul.f32 %v599, %v727
      %v760 = vmul.f32 %v600, %v728
      %v761 = vmul.f32 %v601, %v729
      %v762 = vmul.f32 %v602, %v730
      %v763 = vmul.f32 %v603, %v731
      %v764 = vmul.f32 %v604, %v732
      %v765 = vmul.f32 %v605, %v733
      %v766 = vmul.f32 %v606, %v734
      %v767 = vmul.f32 %v607, %v735
      %vm768 = vcmask 31744
      %769 = vst.msk [vmem:[#allocation2] sm:$0xff] %vm768, %v736
      %770 = vst.msk [vmem:[#allocation2 + $0x8] sm:$0xff] %vm768, %v737
      %771 = vst.msk [vmem:[#allocation2 + $0x10] sm:$0xff] %vm768, %v738
      %772 = vst.msk [vmem:[#allocation2 + $0x18] sm:$0xff] %vm768, %v739
      %773 = vst.msk [vmem:[#allocation2 + $0x20] sm:$0xff] %vm768, %v740
      %774 = vst.msk [vmem:[#allocation2 + $0x28] sm:$0xff] %vm768, %v741
      %775 = vst.msk [vmem:[#allocation2 + $0x30] sm:$0xff] %vm768, %v742
      %776 = vst.msk [vmem:[#allocation2 + $0x38] sm:$0xff] %vm768, %v743
      %777 = vst.msk [vmem:[#allocation2 + $0x40] sm:$0xff] %vm768, %v744
      %778 = vst.msk [vmem:[#allocation2 + $0x48] sm:$0xff] %vm768, %v745
      %779 = vst.msk [vmem:[#allocation2 + $0x50] sm:$0xff] %vm768, %v746
      %780 = vst.msk [vmem:[#allocation2 + $0x58] sm:$0xff] %vm768, %v747
      %781 = vst.msk [vmem:[#allocation2 + $0x60] sm:$0xff] %vm768, %v748
      %782 = vst.msk [vmem:[#allocation2 + $0x68] sm:$0xff] %vm768, %v749
      %783 = vst.msk [vmem:[#allocation2 + $0x70] sm:$0xff] %vm768, %v750
      %784 = vst.msk [vmem:[#allocation2 + $0x78] sm:$0xff] %vm768, %v751
      %785 = vst.msk [vmem:[#allocation2 + $0x80] sm:$0xff] %vm768, %v752
      %786 = vst.msk [vmem:[#allocation2 + $0x88] sm:$0xff] %vm768, %v753
      %787 = vst.msk [vmem:[#allocation2 + $0x90] sm:$0xff] %vm768, %v754
      %788 = vst.msk [vmem:[#allocation2 + $0x98] sm:$0xff] %vm768, %v755
      %789 = vst.msk [vmem:[#allocation2 + $0xa0] sm:$0xff] %vm768, %v756
      %790 = vst.msk [vmem:[#allocation2 + $0xa8] sm:$0xff] %vm768, %v757
      %791 = vst.msk [vmem:[#allocation2 + $0xb0] sm:$0xff] %vm768, %v758
      %792 = vst.msk [vmem:[#allocation2 + $0xb8] sm:$0xff] %vm768, %v759
      %793 = vst.msk [vmem:[#allocation2 + $0xc0] sm:$0xff] %vm768, %v760
      %794 = vst.msk [vmem:[#allocation2 + $0xc8] sm:$0xff] %vm768, %v761
      %795 = vst.msk [vmem:[#allocation2 + $0xd0] sm:$0xff] %vm768, %v762
      %796 = vst.msk [vmem:[#allocation2 + $0xd8] sm:$0xff] %vm768, %v763
      %797 = vst.msk [vmem:[#allocation2 + $0xe0] sm:$0xff] %vm768, %v764
      %798 = vst.msk [vmem:[#allocation2 + $0xe8] sm:$0xff] %vm768, %v765
      %799 = vst.msk [vmem:[#allocation2 + $0xf0] sm:$0xff] %vm768, %v766
      %800 = vst.msk [vmem:[#allocation2 + $0xf8] sm:$0xff] %vm768, %v767
      %v801 = vpack.c.bf16 %v672, %v672
      %v802 = vpack.c.bf16 %v673, %v673
      %v803 = vpack.c.bf16 %v674, %v674
      %v804 = vpack.c.bf16 %v675, %v675
      %v805 = vpack.c.bf16 %v676, %v676
      %v806 = vpack.c.bf16 %v677, %v677
      %v807 = vpack.c.bf16 %v678, %v678
      %v808 = vpack.c.bf16 %v679, %v679
      %v809 = vpack.c.bf16 %v680, %v680
      %v810 = vpack.c.bf16 %v681, %v681
      %v811 = vpack.c.bf16 %v682, %v682
      %v812 = vpack.c.bf16 %v683, %v683
      %v813 = vpack.c.bf16 %v684, %v684
      %v814 = vpack.c.bf16 %v685, %v685
      %v815 = vpack.c.bf16 %v686, %v686
      %v816 = vpack.c.bf16 %v687, %v687
      %v817 = vpack.c.bf16 %v688, %v688
      %v818 = vpack.c.bf16 %v689, %v689
      %v819 = vpack.c.bf16 %v690, %v690
      %v820 = vpack.c.bf16 %v691, %v691
      %v821 = vpack.c.bf16 %v692, %v692
      %v822 = vpack.c.bf16 %v693, %v693
      %v823 = vpack.c.bf16 %v694, %v694
      %v824 = vpack.c.bf16 %v695, %v695
      %v825 = vpack.c.bf16 %v696, %v696
      %v826 = vpack.c.bf16 %v697, %v697
      %v827 = vpack.c.bf16 %v698, %v698
      %v828 = vpack.c.bf16 %v699, %v699
      %v829 = vpack.c.bf16 %v700, %v700
      %v830 = vpack.c.bf16 %v701, %v701
      %v831 = vpack.c.bf16 %v702, %v702
      %v832 = vpack.c.bf16 %v703, %v703
      %v834 = vshrl.u32 %v801, 16
      %v836 = vrot.slane %v834, 7
      %v837 = vshll.u32 %v801, 16
      %v839 = vor.u32 %v836, %v837
      %v840 = vrot.slane %v836, 4
      %v842 = vshrl.u32 %v802, 16
      %v844 = vrot.slane %v842, 7
      %v845 = vshll.u32 %v802, 16
      %v847 = vor.u32 %v844, %v845
      %v848 = vrot.slane %v844, 4
      %v850 = vshrl.u32 %v803, 16
      %v852 = vrot.slane %v850, 7
      %v853 = vshll.u32 %v803, 16
      %v855 = vor.u32 %v852, %v853
      %v856 = vrot.slane %v852, 4
      %v858 = vshrl.u32 %v804, 16
      %v860 = vrot.slane %v858, 7
      %v861 = vshll.u32 %v804, 16
      %v863 = vor.u32 %v860, %v861
      %v864 = vrot.slane %v860, 4
      %v866 = vshrl.u32 %v805, 16
      %v868 = vrot.slane %v866, 7
      %v869 = vshll.u32 %v805, 16
      %v871 = vor.u32 %v868, %v869
      %v872 = vrot.slane %v868, 4
      %v874 = vshrl.u32 %v806, 16
      %v876 = vrot.slane %v874, 7
      %v877 = vshll.u32 %v806, 16
      %v879 = vor.u32 %v876, %v877
      %v880 = vrot.slane %v876, 4
      %v882 = vshrl.u32 %v807, 16
      %v884 = vrot.slane %v882, 7
      %v885 = vshll.u32 %v807, 16
      %v887 = vor.u32 %v884, %v885
      %v888 = vrot.slane %v884, 4
      %v890 = vshrl.u32 %v808, 16
      %v892 = vrot.slane %v890, 7
      %v893 = vshll.u32 %v808, 16
      %v895 = vor.u32 %v892, %v893
      %v896 = vrot.slane %v892, 4
      %s913 = scalar_lea.vmem [#allocation3], 8
      %vm914 = vcmask 27648
      %vm915 = vsmask.f32 7938
      %vm916 = vmand %vm914, %vm915
      %v917 = vld [vmem:[%s913] sm:$0xf]
      %v918 = vsel %vm916, %v839, %v917
      %919 = vst [vmem:[%s913] sm:$0xf] %v918
      %vm920 = vcmask 24576
      %vm921 = vsmask.f32 256
      %vm922 = vmand %vm920, %vm921
      %v923 = vld [vmem:[%s913 + $0x4] sm:$0x1]
      %v924 = vsel %vm922, %v840, %v923
      %925 = vst [vmem:[%s913 + $0x4] sm:$0x1] %v924
      %v926 = vld [vmem:[%s913 + $0x8] sm:$0xf]
      %v927 = vsel %vm916, %v847, %v926
      %928 = vst [vmem:[%s913 + $0x8] sm:$0xf] %v927
      %v929 = vld [vmem:[%s913 + $0xc] sm:$0x1]
      %v930 = vsel %vm922, %v848, %v929
      %931 = vst [vmem:[%s913 + $0xc] sm:$0x1] %v930
      %v932 = vld [vmem:[%s913 + $0x10] sm:$0xf]
      %v933 = vsel %vm916, %v855, %v932
      %934 = vst [vmem:[%s913 + $0x10] sm:$0xf] %v933
      %v935 = vld [vmem:[%s913 + $0x14] sm:$0x1]
      %v936 = vsel %vm922, %v856, %v935
      %937 = vst [vmem:[%s913 + $0x14] sm:$0x1] %v936
      %v938 = vld [vmem:[%s913 + $0x18] sm:$0xf]
      %v939 = vsel %vm916, %v863, %v938
      %940 = vst [vmem:[%s913 + $0x18] sm:$0xf] %v939
      %v941 = vld [vmem:[%s913 + $0x1c] sm:$0x1]
      %v942 = vsel %vm922, %v864, %v941
      %943 = vst [vmem:[%s913 + $0x1c] sm:$0x1] %v942
      %v944 = vld [vmem:[%s913 + $0x20] sm:$0xf]
      %v945 = vsel %vm916, %v871, %v944
      %946 = vst [vmem:[%s913 + $0x20] sm:$0xf] %v945
      %v947 = vld [vmem:[%s913 + $0x24] sm:$0x1]
      %v948 = vsel %vm922, %v872, %v947
      %949 = vst [vmem:[%s913 + $0x24] sm:$0x1] %v948
      %v950 = vld [vmem:[%s913 + $0x28] sm:$0xf]
      %v951 = vsel %vm916, %v879, %v950
      %952 = vst [vmem:[%s913 + $0x28] sm:$0xf] %v951
      %v953 = vld [vmem:[%s913 + $0x2c] sm:$0x1]
      %v954 = vsel %vm922, %v880, %v953
      %955 = vst [vmem:[%s913 + $0x2c] sm:$0x1] %v954
      %v956 = vld [vmem:[%s913 + $0x30] sm:$0xf]
      %v957 = vsel %vm916, %v887, %v956
      %958 = vst [vmem:[%s913 + $0x30] sm:$0xf] %v957
      %v959 = vld [vmem:[%s913 + $0x34] sm:$0x1]
      %v960 = vsel %vm922, %v888, %v959
      %961 = vst [vmem:[%s913 + $0x34] sm:$0x1] %v960
      %v962 = vld [vmem:[%s913 + $0x38] sm:$0xf]
      %v963 = vsel %vm916, %v895, %v962
      %964 = vst [vmem:[%s913 + $0x38] sm:$0xf] %v963
      %v965 = vld [vmem:[%s913 + $0x3c] sm:$0x1]
      %v966 = vsel %vm922, %v896, %v965
      %967 = vst [vmem:[%s913 + $0x3c] sm:$0x1] %v966
      %v969 = vshrl.u32 %v809, 16
      %v971 = vrot.slane %v969, 7
      %v972 = vshll.u32 %v809, 16
      %v974 = vor.u32 %v971, %v972
      %v975 = vrot.slane %v971, 4
      %v977 = vshrl.u32 %v810, 16
      %v979 = vrot.slane %v977, 7
      %v980 = vshll.u32 %v810, 16
      %v982 = vor.u32 %v979, %v980
      %v983 = vrot.slane %v979, 4
      %v985 = vshrl.u32 %v811, 16
      %v987 = vrot.slane %v985, 7
      %v988 = vshll.u32 %v811, 16
      %v990 = vor.u32 %v987, %v988
      %v991 = vrot.slane %v987, 4
      %v993 = vshrl.u32 %v812, 16
      %v995 = vrot.slane %v993, 7
      %v996 = vshll.u32 %v812, 16
      %v998 = vor.u32 %v995, %v996
      %v999 = vrot.slane %v995, 4
      %v1001 = vshrl.u32 %v813, 16
      %v1003 = vrot.slane %v1001, 7
      %v1004 = vshll.u32 %v813, 16
      %v1006 = vor.u32 %v1003, %v1004
      %v1007 = vrot.slane %v1003, 4
      %v1009 = vshrl.u32 %v814, 16
      %v1011 = vrot.slane %v1009, 7
      %v1012 = vshll.u32 %v814, 16
      %v1014 = vor.u32 %v1011, %v1012
      %v1015 = vrot.slane %v1011, 4
      %v1017 = vshrl.u32 %v815, 16
      %v1019 = vrot.slane %v1017, 7
      %v1020 = vshll.u32 %v815, 16
      %v1022 = vor.u32 %v1019, %v1020
      %v1023 = vrot.slane %v1019, 4
      %v1025 = vshrl.u32 %v816, 16
      %v1027 = vrot.slane %v1025, 7
      %v1028 = vshll.u32 %v816, 16
      %v1030 = vor.u32 %v1027, %v1028
      %v1031 = vrot.slane %v1027, 4
      %s1048 = scalar_lea.vmem [#allocation3], 80
      %v1049 = vld [vmem:[%s1048] sm:$0xf]
      %v1050 = vsel %vm916, %v974, %v1049
      %1051 = vst [vmem:[%s1048] sm:$0xf] %v1050
      %v1052 = vld [vmem:[%s1048 + $0x4] sm:$0x1]
      %v1053 = vsel %vm922, %v975, %v1052
      %1054 = vst [vmem:[%s1048 + $0x4] sm:$0x1] %v1053
      %v1055 = vld [vmem:[%s1048 + $0x8] sm:$0xf]
      %v1056 = vsel %vm916, %v982, %v1055
      %1057 = vst [vmem:[%s1048 + $0x8] sm:$0xf] %v1056
      %v1058 = vld [vmem:[%s1048 + $0xc] sm:$0x1]
      %v1059 = vsel %vm922, %v983, %v1058
      %1060 = vst [vmem:[%s1048 + $0xc] sm:$0x1] %v1059
      %v1061 = vld [vmem:[%s1048 + $0x10] sm:$0xf]
      %v1062 = vsel %vm916, %v990, %v1061
      %1063 = vst [vmem:[%s1048 + $0x10] sm:$0xf] %v1062
      %v1064 = vld [vmem:[%s1048 + $0x14] sm:$0x1]
      %v1065 = vsel %vm922, %v991, %v1064
      %1066 = vst [vmem:[%s1048 + $0x14] sm:$0x1] %v1065
      %v1067 = vld [vmem:[%s1048 + $0x18] sm:$0xf]
      %v1068 = vsel %vm916, %v998, %v1067
      %1069 = vst [vmem:[%s1048 + $0x18] sm:$0xf] %v1068
      %v1070 = vld [vmem:[%s1048 + $0x1c] sm:$0x1]
      %v1071 = vsel %vm922, %v999, %v1070
      %1072 = vst [vmem:[%s1048 + $0x1c] sm:$0x1] %v1071
      %v1073 = vld [vmem:[%s1048 + $0x20] sm:$0xf]
      %v1074 = vsel %vm916, %v1006, %v1073
      %1075 = vst [vmem:[%s1048 + $0x20] sm:$0xf] %v1074
      %v1076 = vld [vmem:[%s1048 + $0x24] sm:$0x1]
      %v1077 = vsel %vm922, %v1007, %v1076
      %1078 = vst [vmem:[%s1048 + $0x24] sm:$0x1] %v1077
      %v1079 = vld [vmem:[%s1048 + $0x28] sm:$0xf]
      %v1080 = vsel %vm916, %v1014, %v1079
      %1081 = vst [vmem:[%s1048 + $0x28] sm:$0xf] %v1080
      %v1082 = vld [vmem:[%s1048 + $0x2c] sm:$0x1]
      %v1083 = vsel %vm922, %v1015, %v1082
      %1084 = vst [vmem:[%s1048 + $0x2c] sm:$0x1] %v1083
      %v1085 = vld [vmem:[%s1048 + $0x30] sm:$0xf]
      %v1086 = vsel %vm916, %v1022, %v1085
      %1087 = vst [vmem:[%s1048 + $0x30] sm:$0xf] %v1086
      %v1088 = vld [vmem:[%s1048 + $0x34] sm:$0x1]
      %v1089 = vsel %vm922, %v1023, %v1088
      %1090 = vst [vmem:[%s1048 + $0x34] sm:$0x1] %v1089
      %v1091 = vld [vmem:[%s1048 + $0x38] sm:$0xf]
      %v1092 = vsel %vm916, %v1030, %v1091
      %1093 = vst [vmem:[%s1048 + $0x38] sm:$0xf] %v1092
      %v1094 = vld [vmem:[%s1048 + $0x3c] sm:$0x1]
      %v1095 = vsel %vm922, %v1031, %v1094
      %1096 = vst [vmem:[%s1048 + $0x3c] sm:$0x1] %v1095
      %v1098 = vshrl.u32 %v817, 16
      %v1100 = vrot.slane %v1098, 7
      %v1101 = vshll.u32 %v817, 16
      %v1103 = vor.u32 %v1100, %v1101
      %v1104 = vrot.slane %v1100, 4
      %v1106 = vshrl.u32 %v818, 16
      %v1108 = vrot.slane %v1106, 7
      %v1109 = vshll.u32 %v818, 16
      %v1111 = vor.u32 %v1108, %v1109
      %v1112 = vrot.slane %v1108, 4
      %v1114 = vshrl.u32 %v819, 16
      %v1116 = vrot.slane %v1114, 7
      %v1117 = vshll.u32 %v819, 16
      %v1119 = vor.u32 %v1116, %v1117
      %v1120 = vrot.slane %v1116, 4
      %v1122 = vshrl.u32 %v820, 16
      %v1124 = vrot.slane %v1122, 7
      %v1125 = vshll.u32 %v820, 16
      %v1127 = vor.u32 %v1124, %v1125
      %v1128 = vrot.slane %v1124, 4
      %v1130 = vshrl.u32 %v821, 16
      %v1132 = vrot.slane %v1130, 7
      %v1133 = vshll.u32 %v821, 16
      %v1135 = vor.u32 %v1132, %v1133
      %v1136 = vrot.slane %v1132, 4
      %v1138 = vshrl.u32 %v822, 16
      %v1140 = vrot.slane %v1138, 7
      %v1141 = vshll.u32 %v822, 16
      %v1143 = vor.u32 %v1140, %v1141
      %v1144 = vrot.slane %v1140, 4
      %v1146 = vshrl.u32 %v823, 16
      %v1148 = vrot.slane %v1146, 7
      %v1149 = vshll.u32 %v823, 16
      %v1151 = vor.u32 %v1148, %v1149
      %v1152 = vrot.slane %v1148, 4
      %v1154 = vshrl.u32 %v824, 16
      %v1156 = vrot.slane %v1154, 7
      %v1157 = vshll.u32 %v824, 16
      %v1159 = vor.u32 %v1156, %v1157
      %v1160 = vrot.slane %v1156, 4
      %s1177 = scalar_lea.vmem [#allocation3], 152
      %v1178 = vld [vmem:[%s1177] sm:$0xf]
      %v1179 = vsel %vm916, %v1103, %v1178
      %1180 = vst [vmem:[%s1177] sm:$0xf] %v1179
      %v1181 = vld [vmem:[%s1177 + $0x4] sm:$0x1]
      %v1182 = vsel %vm922, %v1104, %v1181
      %1183 = vst [vmem:[%s1177 + $0x4] sm:$0x1] %v1182
      %v1184 = vld [vmem:[%s1177 + $0x8] sm:$0xf]
      %v1185 = vsel %vm916, %v1111, %v1184
      %1186 = vst [vmem:[%s1177 + $0x8] sm:$0xf] %v1185
      %v1187 = vld [vmem:[%s1177 + $0xc] sm:$0x1]
      %v1188 = vsel %vm922, %v1112, %v1187
      %1189 = vst [vmem:[%s1177 + $0xc] sm:$0x1] %v1188
      %v1190 = vld [vmem:[%s1177 + $0x10] sm:$0xf]
      %v1191 = vsel %vm916, %v1119, %v1190
      %1192 = vst [vmem:[%s1177 + $0x10] sm:$0xf] %v1191
      %v1193 = vld [vmem:[%s1177 + $0x14] sm:$0x1]
      %v1194 = vsel %vm922, %v1120, %v1193
      %1195 = vst [vmem:[%s1177 + $0x14] sm:$0x1] %v1194
      %v1196 = vld [vmem:[%s1177 + $0x18] sm:$0xf]
      %v1197 = vsel %vm916, %v1127, %v1196
      %1198 = vst [vmem:[%s1177 + $0x18] sm:$0xf] %v1197
      %v1199 = vld [vmem:[%s1177 + $0x1c] sm:$0x1]
      %v1200 = vsel %vm922, %v1128, %v1199
      %1201 = vst [vmem:[%s1177 + $0x1c] sm:$0x1] %v1200
      %v1202 = vld [vmem:[%s1177 + $0x20] sm:$0xf]
      %v1203 = vsel %vm916, %v1135, %v1202
      %1204 = vst [vmem:[%s1177 + $0x20] sm:$0xf] %v1203
      %v1205 = vld [vmem:[%s1177 + $0x24] sm:$0x1]
      %v1206 = vsel %vm922, %v1136, %v1205
      %1207 = vst [vmem:[%s1177 + $0x24] sm:$0x1] %v1206
      %v1208 = vld [vmem:[%s1177 + $0x28] sm:$0xf]
      %v1209 = vsel %vm916, %v1143, %v1208
      %1210 = vst [vmem:[%s1177 + $0x28] sm:$0xf] %v1209
      %v1211 = vld [vmem:[%s1177 + $0x2c] sm:$0x1]
      %v1212 = vsel %vm922, %v1144, %v1211
      %1213 = vst [vmem:[%s1177 + $0x2c] sm:$0x1] %v1212
      %v1214 = vld [vmem:[%s1177 + $0x30] sm:$0xf]
      %v1215 = vsel %vm916, %v1151, %v1214
      %1216 = vst [vmem:[%s1177 + $0x30] sm:$0xf] %v1215
      %v1217 = vld [vmem:[%s1177 + $0x34] sm:$0x1]
      %v1218 = vsel %vm922, %v1152, %v1217
      %1219 = vst [vmem:[%s1177 + $0x34] sm:$0x1] %v1218
      %v1220 = vld [vmem:[%s1177 + $0x38] sm:$0xf]
      %v1221 = vsel %vm916, %v1159, %v1220
      %1222 = vst [vmem:[%s1177 + $0x38] sm:$0xf] %v1221
      %v1223 = vld [vmem:[%s1177 + $0x3c] sm:$0x1]
      %v1224 = vsel %vm922, %v1160, %v1223
      %1225 = vst [vmem:[%s1177 + $0x3c] sm:$0x1] %v1224
      %v1227 = vshrl.u32 %v825, 16
      %v1229 = vrot.slane %v1227, 7
      %v1230 = vshll.u32 %v825, 16
      %v1232 = vor.u32 %v1229, %v1230
      %v1233 = vrot.slane %v1229, 4
      %v1235 = vshrl.u32 %v826, 16
      %v1237 = vrot.slane %v1235, 7
      %v1238 = vshll.u32 %v826, 16
      %v1240 = vor.u32 %v1237, %v1238
      %v1241 = vrot.slane %v1237, 4
      %v1243 = vshrl.u32 %v827, 16
      %v1245 = vrot.slane %v1243, 7
      %v1246 = vshll.u32 %v827, 16
      %v1248 = vor.u32 %v1245, %v1246
      %v1249 = vrot.slane %v1245, 4
      %v1251 = vshrl.u32 %v828, 16
      %v1253 = vrot.slane %v1251, 7
      %v1254 = vshll.u32 %v828, 16
      %v1256 = vor.u32 %v1253, %v1254
      %v1257 = vrot.slane %v1253, 4
      %v1259 = vshrl.u32 %v829, 16
      %v1261 = vrot.slane %v1259, 7
      %v1262 = vshll.u32 %v829, 16
      %v1264 = vor.u32 %v1261, %v1262
      %v1265 = vrot.slane %v1261, 4
      %v1267 = vshrl.u32 %v830, 16
      %v1269 = vrot.slane %v1267, 7
      %v1270 = vshll.u32 %v830, 16
      %v1272 = vor.u32 %v1269, %v1270
      %v1273 = vrot.slane %v1269, 4
      %v1275 = vshrl.u32 %v831, 16
      %v1277 = vrot.slane %v1275, 7
      %v1278 = vshll.u32 %v831, 16
      %v1280 = vor.u32 %v1277, %v1278
      %v1281 = vrot.slane %v1277, 4
      %v1283 = vshrl.u32 %v832, 16
      %v1285 = vrot.slane %v1283, 7
      %v1286 = vshll.u32 %v832, 16
      %v1288 = vor.u32 %v1285, %v1286
      %v1289 = vrot.slane %v1285, 4
      %s1306 = scalar_lea.vmem [#allocation3], 224
      %v1307 = vld [vmem:[%s1306] sm:$0xf]
      %v1308 = vsel %vm916, %v1232, %v1307
      %1309 = vst [vmem:[%s1306] sm:$0xf] %v1308
      %v1310 = vld [vmem:[%s1306 + $0x4] sm:$0x1]
      %v1311 = vsel %vm922, %v1233, %v1310
      %1312 = vst [vmem:[%s1306 + $0x4] sm:$0x1] %v1311
      %v1313 = vld [vmem:[%s1306 + $0x8] sm:$0xf]
      %v1314 = vsel %vm916, %v1240, %v1313
      %1315 = vst [vmem:[%s1306 + $0x8] sm:$0xf] %v1314
      %v1316 = vld [vmem:[%s1306 + $0xc] sm:$0x1]
      %v1317 = vsel %vm922, %v1241, %v1316
      %1318 = vst [vmem:[%s1306 + $0xc] sm:$0x1] %v1317
      %v1319 = vld [vmem:[%s1306 + $0x10] sm:$0xf]
      %v1320 = vsel %vm916, %v1248, %v1319
      %1321 = vst [vmem:[%s1306 + $0x10] sm:$0xf] %v1320
      %v1322 = vld [vmem:[%s1306 + $0x14] sm:$0x1]
      %v1323 = vsel %vm922, %v1249, %v1322
      %1324 = vst [vmem:[%s1306 + $0x14] sm:$0x1] %v1323
      %v1325 = vld [vmem:[%s1306 + $0x18] sm:$0xf]
      %v1326 = vsel %vm916, %v1256, %v1325
      %1327 = vst [vmem:[%s1306 + $0x18] sm:$0xf] %v1326
      %v1328 = vld [vmem:[%s1306 + $0x1c] sm:$0x1]
      %v1329 = vsel %vm922, %v1257, %v1328
      %1330 = vst [vmem:[%s1306 + $0x1c] sm:$0x1] %v1329
      %v1331 = vld [vmem:[%s1306 + $0x20] sm:$0xf]
      %v1332 = vsel %vm916, %v1264, %v1331
      %1333 = vst [vmem:[%s1306 + $0x20] sm:$0xf] %v1332
      %v1334 = vld [vmem:[%s1306 + $0x24] sm:$0x1]
      %v1335 = vsel %vm922, %v1265, %v1334
      %1336 = vst [vmem:[%s1306 + $0x24] sm:$0x1] %v1335
      %v1337 = vld [vmem:[%s1306 + $0x28] sm:$0xf]
      %v1338 = vsel %vm916, %v1272, %v1337
      %1339 = vst [vmem:[%s1306 + $0x28] sm:$0xf] %v1338
      %v1340 = vld [vmem:[%s1306 + $0x2c] sm:$0x1]
      %v1341 = vsel %vm922, %v1273, %v1340
      %1342 = vst [vmem:[%s1306 + $0x2c] sm:$0x1] %v1341
      %v1343 = vld [vmem:[%s1306 + $0x30] sm:$0xf]
      %v1344 = vsel %vm916, %v1280, %v1343
      %1345 = vst [vmem:[%s1306 + $0x30] sm:$0xf] %v1344
      %v1346 = vld [vmem:[%s1306 + $0x34] sm:$0x1]
      %v1347 = vsel %vm922, %v1281, %v1346
      %1348 = vst [vmem:[%s1306 + $0x34] sm:$0x1] %v1347
      %v1349 = vld [vmem:[%s1306 + $0x38] sm:$0xf]
      %v1350 = vsel %vm916, %v1288, %v1349
      %1351 = vst [vmem:[%s1306 + $0x38] sm:$0xf] %v1350
      %v1352 = vld [vmem:[%s1306 + $0x3c] sm:$0x1]
      %v1353 = vsel %vm922, %v1289, %v1352
      %1354 = vst [vmem:[%s1306 + $0x3c] sm:$0x1] %v1353
      %s1355 = scalar_lea.vmem [#allocation3], 216
      %v1356 = vld [vmem:[%s1355] sm:$0xf]
      %v1357 = vld [vmem:[%s1355 + $0x8] sm:$0xf]
      %v1358 = vld [vmem:[%s1355 + $0x10] sm:$0xf]
      %v1359 = vld [vmem:[%s1355 + $0x18] sm:$0xf]
      %v1360 = vld [vmem:[%s1355 + $0x20] sm:$0xf]
      %v1361 = vld [vmem:[%s1355 + $0x28] sm:$0xf]
      %v1362 = vld [vmem:[%s1355 + $0x30] sm:$0xf]
      %v1363 = vld [vmem:[%s1355 + $0x38] sm:$0xf]
      %v1364 = vld [vmem:[%s2] sm:$0x3]
      %s1365 = scalar_lea.vmem [#allocation3], 144
      %v1366 = vld [vmem:[%s1365] sm:$0xf]
      %v1367 = vld [vmem:[%s1365 + $0x4] sm:$0x1]
      %v1368 = vld [vmem:[%s1365 + $0x8] sm:$0xf]
      %v1369 = vld [vmem:[%s1365 + $0xc] sm:$0x1]
      %v1370 = vld [vmem:[%s1365 + $0x10] sm:$0xf]
      %v1371 = vld [vmem:[%s1365 + $0x14] sm:$0x1]
      %v1372 = vld [vmem:[%s1365 + $0x18] sm:$0xf]
      %v1373 = vld [vmem:[%s1365 + $0x1c] sm:$0x1]
      %v1374 = vld [vmem:[%s1365 + $0x20] sm:$0xf]
      %v1375 = vld [vmem:[%s1365 + $0x24] sm:$0x1]
      %v1376 = vld [vmem:[%s1365 + $0x28] sm:$0xf]
      %v1377 = vld [vmem:[%s1365 + $0x2c] sm:$0x1]
      %v1378 = vld [vmem:[%s1365 + $0x30] sm:$0xf]
      %v1379 = vld [vmem:[%s1365 + $0x34] sm:$0x1]
      %v1380 = vld [vmem:[%s1365 + $0x38] sm:$0xf]
      %v1381 = vld [vmem:[%s1365 + $0x3c] sm:$0x1]
      %vm1382 = vsmask.f32 3328
      %vm1383 = vsmask.f32 7440
      %vm1384 = vmor %vm1382, %vm1383
      %v1386 = vshrl.u32 %v1366, 16
      %v1388 = vrot.slane %v1386, 4
      %v1389 = vshll.u32 %v1366, 16
      %v1391 = vrot.slane %v1389, 5
      %v1392 = vor.u32 %v1388, %v1391
      %v1393 = vrot.slane %v1392, 4
      %v1395 = vshll.u32 %v1367, 16
      %v1397 = vrot.slane %v1395, 5
      %v1398 = vsel %vm1384, %v1393, %v1397
      %v1400 = vshrl.u32 %v1368, 16
      %v1402 = vrot.slane %v1400, 4
      %v1403 = vshll.u32 %v1368, 16
      %v1405 = vrot.slane %v1403, 5
      %v1406 = vor.u32 %v1402, %v1405
      %v1407 = vrot.slane %v1406, 4
      %v1409 = vshll.u32 %v1369, 16
      %v1411 = vrot.slane %v1409, 5
      %v1412 = vsel %vm1384, %v1407, %v1411
      %v1414 = vshrl.u32 %v1370, 16
      %v1416 = vrot.slane %v1414, 4
      %v1417 = vshll.u32 %v1370, 16
      %v1419 = vrot.slane %v1417, 5
      %v1420 = vor.u32 %v1416, %v1419
      %v1421 = vrot.slane %v1420, 4
      %v1423 = vshll.u32 %v1371, 16
      %v1425 = vrot.slane %v1423, 5
      %v1426 = vsel %vm1384, %v1421, %v1425
      %v1428 = vshrl.u32 %v1372, 16
      %v1430 = vrot.slane %v1428, 4
      %v1431 = vshll.u32 %v1372, 16
      %v1433 = vrot.slane %v1431, 5
      %v1434 = vor.u32 %v1430, %v1433
      %v1435 = vrot.slane %v1434, 4
      %v1437 = vshll.u32 %v1373, 16
      %v1439 = vrot.slane %v1437, 5
      %v1440 = vsel %vm1384, %v1435, %v1439
      %v1442 = vshrl.u32 %v1374, 16
      %v1444 = vrot.slane %v1442, 4
      %v1445 = vshll.u32 %v1374, 16
      %v1447 = vrot.slane %v1445, 5
      %v1448 = vor.u32 %v1444, %v1447
      %v1449 = vrot.slane %v1448, 4
      %v1451 = vshll.u32 %v1375, 16
      %v1453 = vrot.slane %v1451, 5
      %v1454 = vsel %vm1384, %v1449, %v1453
      %v1456 = vshrl.u32 %v1376, 16
      %v1458 = vrot.slane %v1456, 4
      %v1459 = vshll.u32 %v1376, 16
      %v1461 = vrot.slane %v1459, 5
      %v1462 = vor.u32 %v1458, %v1461
      %v1463 = vrot.slane %v1462, 4
      %v1465 = vshll.u32 %v1377, 16
      %v1467 = vrot.slane %v1465, 5
      %v1468 = vsel %vm1384, %v1463, %v1467
      %v1470 = vshrl.u32 %v1378, 16
      %v1472 = vrot.slane %v1470, 4
      %v1473 = vshll.u32 %v1378, 16
      %v1475 = vrot.slane %v1473, 5
      %v1476 = vor.u32 %v1472, %v1475
      %v1477 = vrot.slane %v1476, 4
      %v1479 = vshll.u32 %v1379, 16
      %v1481 = vrot.slane %v1479, 5
      %v1482 = vsel %vm1384, %v1477, %v1481
      %v1484 = vshrl.u32 %v1380, 16
      %v1486 = vrot.slane %v1484, 4
      %v1487 = vshll.u32 %v1380, 16
      %v1489 = vrot.slane %v1487, 5
      %v1490 = vor.u32 %v1486, %v1489
      %v1491 = vrot.slane %v1490, 4
      %v1493 = vshll.u32 %v1381, 16
      %v1495 = vrot.slane %v1493, 5
      %v1496 = vsel %vm1384, %v1491, %v1495
      %s1497 = scalar_lea.vmem %s2, 2
      %v1498 = vld [vmem:[%s1497] sm:$0x3]
      %v1499 = vunpack.c.l.b16 %v1398
      %v1500 = vunpack.c.l.b16 %v1412
      %v1501 = vunpack.c.l.b16 %v1426
      %v1502 = vunpack.c.l.b16 %v1440
      %v1503 = vunpack.c.l.b16 %v1454
      %v1504 = vunpack.c.l.b16 %v1468
      %v1505 = vunpack.c.l.b16 %v1482
      %v1506 = vunpack.c.l.b16 %v1496
      %v1507 = vpack.c.b16 %v1500, %v1499
      %v1508 = vpack.c.b16 %v1502, %v1501
      %v1509 = vpack.c.b16 %v1504, %v1503
      %v1510 = vpack.c.b16 %v1506, %v1505
      %v1512 = vsel %vm768, %v1507, 0
      %v1515 = vsel %vm768, %v1508, 0
      %v1518 = vsel %vm768, %v1509, 0
      %v1521 = vsel %vm768, %v1510, 0
      %vm1523 = vcmask 1041408
      %v1525 = vsel %vm1523, %v1498, 0
      %1527 = vmatpush.bf16.msra.mxu0 0
      %1528 = vmatpush.bf16.msra.mxu0 0
      %1529 = vmatpush.bf16.msra.mxu0 0
      %1530 = vmatpush.bf16.msra.mxu0 0
      %1531 = vmatpush.bf16.msra.mxu0 0
      %1532 = vmatpush.bf16.msra.mxu0 0
      %1533 = vmatpush.bf16.msra.mxu0 0
      %1534 = vmatpush.bf16.msra.mxu0 %v1525
      %1535 = vmatmul.bf16.gmra.mxu0 %v1512
      %v1536 = vpop.f32.mrf.mxu0
      %v1537 = vadd.f32 0.0, %v1536
      %v1538 = vpop.f32.mrf.mxu0
      %v1539 = vadd.f32 0.0, %v1538
      %1540 = vmatmul.bf16.gmra.mxu0 %v1515
      %v1541 = vpop.f32.mrf.mxu0
      %v1542 = vadd.f32 0.0, %v1541
      %v1543 = vpop.f32.mrf.mxu0
      %v1544 = vadd.f32 0.0, %v1543
      %1545 = vmatmul.bf16.gmra.mxu0 %v1518
      %v1546 = vpop.f32.mrf.mxu0
      %v1547 = vadd.f32 0.0, %v1546
      %v1548 = vpop.f32.mrf.mxu0
      %v1549 = vadd.f32 0.0, %v1548
      %1550 = vmatmul.bf16.gmra.mxu0 %v1521
      %v1551 = vpop.f32.mrf.mxu0
      %v1552 = vadd.f32 0.0, %v1551
      %v1553 = vpop.f32.mrf.mxu0
      %v1554 = vadd.f32 0.0, %v1553
      %1555 = vdwg.mxu0
      %v1564 = vunpack.c.l.b16 %v1356
      %v1565 = vunpack.c.l.b16 %v1357
      %v1566 = vunpack.c.l.b16 %v1358
      %v1567 = vunpack.c.l.b16 %v1359
      %v1568 = vunpack.c.l.b16 %v1360
      %v1569 = vunpack.c.l.b16 %v1361
      %v1570 = vunpack.c.l.b16 %v1362
      %v1571 = vunpack.c.l.b16 %v1363
      %v1572 = vpack.c.b16 %v1565, %v1564
      %v1573 = vpack.c.b16 %v1567, %v1566
      %v1574 = vpack.c.b16 %v1569, %v1568
      %v1575 = vpack.c.b16 %v1571, %v1570
      %v1577 = vsel %vm768, %v1572, 0
      %v1580 = vsel %vm768, %v1573, 0
      %v1583 = vsel %vm768, %v1574, 0
      %v1586 = vsel %vm768, %v1575, 0
      %v1589 = vsel %vm1523, %v1364, 0
      %1591 = vmatpush.bf16.msra.mxu0 0
      %1592 = vmatpush.bf16.msra.mxu0 0
      %1593 = vmatpush.bf16.msra.mxu0 0
      %1594 = vmatpush.bf16.msra.mxu0 0
      %1595 = vmatpush.bf16.msra.mxu0 0
      %1596 = vmatpush.bf16.msra.mxu0 0
      %1597 = vmatpush.bf16.msra.mxu0 0
      %1598 = vmatpush.bf16.msra.mxu0 %v1589
      %1599 = vmatmul.bf16.gmra.mxu0 %v1577
      %v1600 = vpop.f32.mrf.mxu0
      %v1601 = vadd.f32 %v1537, %v1600
      %v1602 = vpop.f32.mrf.mxu0
      %v1603 = vadd.f32 %v1539, %v1602
      %1604 = vmatmul.bf16.gmra.mxu0 %v1580
      %v1605 = vpop.f32.mrf.mxu0
      %v1606 = vadd.f32 %v1542, %v1605
      %v1607 = vpop.f32.mrf.mxu0
      %v1608 = vadd.f32 %v1544, %v1607
      %1609 = vmatmul.bf16.gmra.mxu0 %v1583
      %v1610 = vpop.f32.mrf.mxu0
      %v1611 = vadd.f32 %v1547, %v1610
      %v1612 = vpop.f32.mrf.mxu0
      %v1613 = vadd.f32 %v1549, %v1612
      %1614 = vmatmul.bf16.gmra.mxu0 %v1586
      %v1615 = vpop.f32.mrf.mxu0
      %v1616 = vadd.f32 %v1552, %v1615
      %v1617 = vpop.f32.mrf.mxu0
      %v1618 = vadd.f32 %v1554, %v1617
      %1619 = vdwg.mxu0
      %v1620 = vld [vmem:[%s1355] sm:$0xf]
      %v1621 = vld [vmem:[%s1355 + $0x4] sm:$0x1]
      %v1622 = vld [vmem:[%s1355 + $0x8] sm:$0xf]
      %v1623 = vld [vmem:[%s1355 + $0xc] sm:$0x1]
      %v1624 = vld [vmem:[%s1355 + $0x10] sm:$0xf]
      %v1625 = vld [vmem:[%s1355 + $0x14] sm:$0x1]
      %v1626 = vld [vmem:[%s1355 + $0x18] sm:$0xf]
      %v1627 = vld [vmem:[%s1355 + $0x1c] sm:$0x1]
      %v1628 = vld [vmem:[%s1355 + $0x20] sm:$0xf]
      %v1629 = vld [vmem:[%s1355 + $0x24] sm:$0x1]
      %v1630 = vld [vmem:[%s1355 + $0x28] sm:$0xf]
      %v1631 = vld [vmem:[%s1355 + $0x2c] sm:$0x1]
      %v1632 = vld [vmem:[%s1355 + $0x30] sm:$0xf]
      %v1633 = vld [vmem:[%s1355 + $0x34] sm:$0x1]
      %v1634 = vld [vmem:[%s1355 + $0x38] sm:$0xf]
      %v1635 = vld [vmem:[%s1355 + $0x3c] sm:$0x1]
      %v1637 = vshrl.u32 %v1620, 16
      %v1639 = vrot.slane %v1637, 4
      %v1640 = vshll.u32 %v1620, 16
      %v1642 = vrot.slane %v1640, 5
      %v1643 = vor.u32 %v1639, %v1642
      %v1644 = vrot.slane %v1643, 4
      %v1646 = vshll.u32 %v1621, 16
      %v1648 = vrot.slane %v1646, 5
      %v1649 = vsel %vm1384, %v1644, %v1648
      %v1651 = vshrl.u32 %v1622, 16
      %v1653 = vrot.slane %v1651, 4
      %v1654 = vshll.u32 %v1622, 16
      %v1656 = vrot.slane %v1654, 5
      %v1657 = vor.u32 %v1653, %v1656
      %v1658 = vrot.slane %v1657, 4
      %v1660 = vshll.u32 %v1623, 16
      %v1662 = vrot.slane %v1660, 5
      %v1663 = vsel %vm1384, %v1658, %v1662
      %v1665 = vshrl.u32 %v1624, 16
      %v1667 = vrot.slane %v1665, 4
      %v1668 = vshll.u32 %v1624, 16
      %v1670 = vrot.slane %v1668, 5
      %v1671 = vor.u32 %v1667, %v1670
      %v1672 = vrot.slane %v1671, 4
      %v1674 = vshll.u32 %v1625, 16
      %v1676 = vrot.slane %v1674, 5
      %v1677 = vsel %vm1384, %v1672, %v1676
      %v1679 = vshrl.u32 %v1626, 16
      %v1681 = vrot.slane %v1679, 4
      %v1682 = vshll.u32 %v1626, 16
      %v1684 = vrot.slane %v1682, 5
      %v1685 = vor.u32 %v1681, %v1684
      %v1686 = vrot.slane %v1685, 4
      %v1688 = vshll.u32 %v1627, 16
      %v1690 = vrot.slane %v1688, 5
      %v1691 = vsel %vm1384, %v1686, %v1690
      %v1693 = vshrl.u32 %v1628, 16
      %v1695 = vrot.slane %v1693, 4
      %v1696 = vshll.u32 %v1628, 16
      %v1698 = vrot.slane %v1696, 5
      %v1699 = vor.u32 %v1695, %v1698
      %v1700 = vrot.slane %v1699, 4
      %v1702 = vshll.u32 %v1629, 16
      %v1704 = vrot.slane %v1702, 5
      %v1705 = vsel %vm1384, %v1700, %v1704
      %v1707 = vshrl.u32 %v1630, 16
      %v1709 = vrot.slane %v1707, 4
      %v1710 = vshll.u32 %v1630, 16
      %v1712 = vrot.slane %v1710, 5
      %v1713 = vor.u32 %v1709, %v1712
      %v1714 = vrot.slane %v1713, 4
      %v1716 = vshll.u32 %v1631, 16
      %v1718 = vrot.slane %v1716, 5
      %v1719 = vsel %vm1384, %v1714, %v1718
      %v1721 = vshrl.u32 %v1632, 16
      %v1723 = vrot.slane %v1721, 4
      %v1724 = vshll.u32 %v1632, 16
      %v1726 = vrot.slane %v1724, 5
      %v1727 = vor.u32 %v1723, %v1726
      %v1728 = vrot.slane %v1727, 4
      %v1730 = vshll.u32 %v1633, 16
      %v1732 = vrot.slane %v1730, 5
      %v1733 = vsel %vm1384, %v1728, %v1732
      %v1735 = vshrl.u32 %v1634, 16
      %v1737 = vrot.slane %v1735, 4
      %v1738 = vshll.u32 %v1634, 16
      %v1740 = vrot.slane %v1738, 5
      %v1741 = vor.u32 %v1737, %v1740
      %v1742 = vrot.slane %v1741, 4
      %v1744 = vshll.u32 %v1635, 16
      %v1746 = vrot.slane %v1744, 5
      %v1747 = vsel %vm1384, %v1742, %v1746
      %s1748 = scalar_lea.vmem %s2, 4
      %v1749 = vld [vmem:[%s1748] sm:$0x3]
      %v1750 = vunpack.c.l.b16 %v1649
      %v1751 = vunpack.c.l.b16 %v1663
      %v1752 = vunpack.c.l.b16 %v1677
      %v1753 = vunpack.c.l.b16 %v1691
      %v1754 = vunpack.c.l.b16 %v1705
      %v1755 = vunpack.c.l.b16 %v1719
      %v1756 = vunpack.c.l.b16 %v1733
      %v1757 = vunpack.c.l.b16 %v1747
      %v1758 = vpack.c.b16 %v1751, %v1750
      %v1759 = vpack.c.b16 %v1753, %v1752
      %v1760 = vpack.c.b16 %v1755, %v1754
      %v1761 = vpack.c.b16 %v1757, %v1756
      %v1763 = vsel %vm768, %v1758, 0
      %v1766 = vsel %vm768, %v1759, 0
      %v1769 = vsel %vm768, %v1760, 0
      %v1772 = vsel %vm768, %v1761, 0
      %v1775 = vsel %vm1523, %v1749, 0
      %1777 = vmatpush.bf16.msra.mxu0 0
      %1778 = vmatpush.bf16.msra.mxu0 0
      %1779 = vmatpush.bf16.msra.mxu0 0
      %1780 = vmatpush.bf16.msra.mxu0 0
      %1781 = vmatpush.bf16.msra.mxu0 0
      %1782 = vmatpush.bf16.msra.mxu0 0
      %1783 = vmatpush.bf16.msra.mxu0 0
      %1784 = vmatpush.bf16.msra.mxu0 %v1775
      %1785 = vmatmul.bf16.gmra.mxu0 %v1763
      %v1786 = vpop.f32.mrf.mxu0
      %v1787 = vadd.f32 0.0, %v1786
      %v1788 = vpop.f32.mrf.mxu0
      %v1789 = vadd.f32 0.0, %v1788
      %1790 = vmatmul.bf16.gmra.mxu0 %v1766
      %v1791 = vpop.f32.mrf.mxu0
      %v1792 = vadd.f32 0.0, %v1791
      %v1793 = vpop.f32.mrf.mxu0
      %v1794 = vadd.f32 0.0, %v1793
      %1795 = vmatmul.bf16.gmra.mxu0 %v1769
      %v1796 = vpop.f32.mrf.mxu0
      %v1797 = vadd.f32 0.0, %v1796
      %v1798 = vpop.f32.mrf.mxu0
      %v1799 = vadd.f32 0.0, %v1798
      %1800 = vmatmul.bf16.gmra.mxu0 %v1772
      %v1801 = vpop.f32.mrf.mxu0
      %v1802 = vadd.f32 0.0, %v1801
      %v1803 = vpop.f32.mrf.mxu0
      %v1804 = vadd.f32 0.0, %v1803
      %1805 = vdwg.mxu0
      %v1806 = vadd.f32 %v1601, %v1787
      %v1807 = vadd.f32 %v1603, %v1789
      %v1808 = vadd.f32 %v1606, %v1792
      %v1809 = vadd.f32 %v1608, %v1794
      %v1810 = vadd.f32 %v1611, %v1797
      %v1811 = vadd.f32 %v1613, %v1799
      %v1812 = vadd.f32 %v1616, %v1802
      %v1813 = vadd.f32 %v1618, %v1804
      %v1814 = vld [vmem:[%s1048] sm:$0xf]
      %v1815 = vld [vmem:[%s1048 + $0x8] sm:$0xf]
      %v1816 = vld [vmem:[%s1048 + $0x10] sm:$0xf]
      %v1817 = vld [vmem:[%s1048 + $0x18] sm:$0xf]
      %v1818 = vld [vmem:[%s1048 + $0x20] sm:$0xf]
      %v1819 = vld [vmem:[%s1048 + $0x28] sm:$0xf]
      %v1820 = vld [vmem:[%s1048 + $0x30] sm:$0xf]
      %v1821 = vld [vmem:[%s1048 + $0x38] sm:$0xf]
      %s1822 = scalar_lea.vmem %s2, 6
      %v1823 = vld [vmem:[%s1822] sm:$0x3]
      %v1832 = vunpack.c.l.b16 %v1814
      %v1833 = vunpack.c.l.b16 %v1815
      %v1834 = vunpack.c.l.b16 %v1816
      %v1835 = vunpack.c.l.b16 %v1817
      %v1836 = vunpack.c.l.b16 %v1818
      %v1837 = vunpack.c.l.b16 %v1819
      %v1838 = vunpack.c.l.b16 %v1820
      %v1839 = vunpack.c.l.b16 %v1821
      %v1840 = vpack.c.b16 %v1833, %v1832
      %v1841 = vpack.c.b16 %v1835, %v1834
      %v1842 = vpack.c.b16 %v1837, %v1836
      %v1843 = vpack.c.b16 %v1839, %v1838
      %v1845 = vsel %vm768, %v1840, 0
      %v1848 = vsel %vm768, %v1841, 0
      %v1851 = vsel %vm768, %v1842, 0
      %v1854 = vsel %vm768, %v1843, 0
      %v1857 = vsel %vm1523, %v1823, 0
      %1859 = vmatpush.bf16.msra.mxu0 0
      %1860 = vmatpush.bf16.msra.mxu0 0
      %1861 = vmatpush.bf16.msra.mxu0 0
      %1862 = vmatpush.bf16.msra.mxu0 0
      %1863 = vmatpush.bf16.msra.mxu0 0
      %1864 = vmatpush.bf16.msra.mxu0 0
      %1865 = vmatpush.bf16.msra.mxu0 0
      %1866 = vmatpush.bf16.msra.mxu0 %v1857
      %1867 = vmatmul.bf16.gmra.mxu0 %v1845
      %v1868 = vpop.f32.mrf.mxu0
      %v1869 = vadd.f32 0.0, %v1868
      %v1870 = vpop.f32.mrf.mxu0
      %v1871 = vadd.f32 0.0, %v1870
      %1872 = vmatmul.bf16.gmra.mxu0 %v1848
      %v1873 = vpop.f32.mrf.mxu0
      %v1874 = vadd.f32 0.0, %v1873
      %v1875 = vpop.f32.mrf.mxu0
      %v1876 = vadd.f32 0.0, %v1875
      %1877 = vmatmul.bf16.gmra.mxu0 %v1851
      %v1878 = vpop.f32.mrf.mxu0
      %v1879 = vadd.f32 0.0, %v1878
      %v1880 = vpop.f32.mrf.mxu0
      %v1881 = vadd.f32 0.0, %v1880
      %1882 = vmatmul.bf16.gmra.mxu0 %v1854
      %v1883 = vpop.f32.mrf.mxu0
      %v1884 = vadd.f32 0.0, %v1883
      %v1885 = vpop.f32.mrf.mxu0
      %v1886 = vadd.f32 0.0, %v1885
      %1887 = vdwg.mxu0
      %v1888 = vadd.f32 %v1806, %v1869
      %v1889 = vadd.f32 %v1807, %v1871
      %v1890 = vadd.f32 %v1808, %v1874
      %v1891 = vadd.f32 %v1809, %v1876
      %v1892 = vadd.f32 %v1810, %v1879
      %v1893 = vadd.f32 %v1811, %v1881
      %v1894 = vadd.f32 %v1812, %v1884
      %v1895 = vadd.f32 %v1813, %v1886
      %v1896 = vld [vmem:[%s913] sm:$0xf]
      %v1897 = vld [vmem:[%s913 + $0x4] sm:$0x1]
      %v1898 = vld [vmem:[%s913 + $0x8] sm:$0xf]
      %v1899 = vld [vmem:[%s913 + $0xc] sm:$0x1]
      %v1900 = vld [vmem:[%s913 + $0x10] sm:$0xf]
      %v1901 = vld [vmem:[%s913 + $0x14] sm:$0x1]
      %v1902 = vld [vmem:[%s913 + $0x18] sm:$0xf]
      %v1903 = vld [vmem:[%s913 + $0x1c] sm:$0x1]
      %v1904 = vld [vmem:[%s913 + $0x20] sm:$0xf]
      %v1905 = vld [vmem:[%s913 + $0x24] sm:$0x1]
      %v1906 = vld [vmem:[%s913 + $0x28] sm:$0xf]
      %v1907 = vld [vmem:[%s913 + $0x2c] sm:$0x1]
      %v1908 = vld [vmem:[%s913 + $0x30] sm:$0xf]
      %v1909 = vld [vmem:[%s913 + $0x34] sm:$0x1]
      %v1910 = vld [vmem:[%s913 + $0x38] sm:$0xf]
      %v1911 = vld [vmem:[%s913 + $0x3c] sm:$0x1]
      %v1913 = vshrl.u32 %v1896, 16
      %v1915 = vrot.slane %v1913, 4
      %v1916 = vshll.u32 %v1896, 16
      %v1918 = vrot.slane %v1916, 5
      %v1919 = vor.u32 %v1915, %v1918
      %v1920 = vrot.slane %v1919, 4
      %v1922 = vshll.u32 %v1897, 16
      %v1924 = vrot.slane %v1922, 5
      %v1925 = vsel %vm1384, %v1920, %v1924
      %v1927 = vshrl.u32 %v1898, 16
      %v1929 = vrot.slane %v1927, 4
      %v1930 = vshll.u32 %v1898, 16
      %v1932 = vrot.slane %v1930, 5
      %v1933 = vor.u32 %v1929, %v1932
      %v1934 = vrot.slane %v1933, 4
      %v1936 = vshll.u32 %v1899, 16
      %v1938 = vrot.slane %v1936, 5
      %v1939 = vsel %vm1384, %v1934, %v1938
      %v1941 = vshrl.u32 %v1900, 16
      %v1943 = vrot.slane %v1941, 4
      %v1944 = vshll.u32 %v1900, 16
      %v1946 = vrot.slane %v1944, 5
      %v1947 = vor.u32 %v1943, %v1946
      %v1948 = vrot.slane %v1947, 4
      %v1950 = vshll.u32 %v1901, 16
      %v1952 = vrot.slane %v1950, 5
      %v1953 = vsel %vm1384, %v1948, %v1952
      %v1955 = vshrl.u32 %v1902, 16
      %v1957 = vrot.slane %v1955, 4
      %v1958 = vshll.u32 %v1902, 16
      %v1960 = vrot.slane %v1958, 5
      %v1961 = vor.u32 %v1957, %v1960
      %v1962 = vrot.slane %v1961, 4
      %v1964 = vshll.u32 %v1903, 16
      %v1966 = vrot.slane %v1964, 5
      %v1967 = vsel %vm1384, %v1962, %v1966
      %v1969 = vshrl.u32 %v1904, 16
      %v1971 = vrot.slane %v1969, 4
      %v1972 = vshll.u32 %v1904, 16
      %v1974 = vrot.slane %v1972, 5
      %v1975 = vor.u32 %v1971, %v1974
      %v1976 = vrot.slane %v1975, 4
      %v1978 = vshll.u32 %v1905, 16
      %v1980 = vrot.slane %v1978, 5
      %v1981 = vsel %vm1384, %v1976, %v1980
      %v1983 = vshrl.u32 %v1906, 16
      %v1985 = vrot.slane %v1983, 4
      %v1986 = vshll.u32 %v1906, 16
      %v1988 = vrot.slane %v1986, 5
      %v1989 = vor.u32 %v1985, %v1988
      %v1990 = vrot.slane %v1989, 4
      %v1992 = vshll.u32 %v1907, 16
      %v1994 = vrot.slane %v1992, 5
      %v1995 = vsel %vm1384, %v1990, %v1994
      %v1997 = vshrl.u32 %v1908, 16
      %v1999 = vrot.slane %v1997, 4
      %v2000 = vshll.u32 %v1908, 16
      %v2002 = vrot.slane %v2000, 5
      %v2003 = vor.u32 %v1999, %v2002
      %v2004 = vrot.slane %v2003, 4
      %v2006 = vshll.u32 %v1909, 16
      %v2008 = vrot.slane %v2006, 5
      %v2009 = vsel %vm1384, %v2004, %v2008
      %v2011 = vshrl.u32 %v1910, 16
      %v2013 = vrot.slane %v2011, 4
      %v2014 = vshll.u32 %v1910, 16
      %v2016 = vrot.slane %v2014, 5
      %v2017 = vor.u32 %v2013, %v2016
      %v2018 = vrot.slane %v2017, 4
      %v2020 = vshll.u32 %v1911, 16
      %v2022 = vrot.slane %v2020, 5
      %v2023 = vsel %vm1384, %v2018, %v2022
      %s2024 = scalar_lea.vmem %s2, 8
      %v2025 = vld [vmem:[%s2024] sm:$0x3]
      %v2026 = vunpack.c.l.b16 %v1925
      %v2027 = vunpack.c.l.b16 %v1939
      %v2028 = vunpack.c.l.b16 %v1953
      %v2029 = vunpack.c.l.b16 %v1967
      %v2030 = vunpack.c.l.b16 %v1981
      %v2031 = vunpack.c.l.b16 %v1995
      %v2032 = vunpack.c.l.b16 %v2009
      %v2033 = vunpack.c.l.b16 %v2023
      %v2034 = vpack.c.b16 %v2027, %v2026
      %v2035 = vpack.c.b16 %v2029, %v2028
      %v2036 = vpack.c.b16 %v2031, %v2030
      %v2037 = vpack.c.b16 %v2033, %v2032
      %v2039 = vsel %vm768, %v2034, 0
      %v2042 = vsel %vm768, %v2035, 0
      %v2045 = vsel %vm768, %v2036, 0
      %v2048 = vsel %vm768, %v2037, 0
      %v2051 = vsel %vm1523, %v2025, 0
      %2053 = vmatpush.bf16.msra.mxu0 0
      %2054 = vmatpush.bf16.msra.mxu0 0
      %2055 = vmatpush.bf16.msra.mxu0 0
      %2056 = vmatpush.bf16.msra.mxu0 0
      %2057 = vmatpush.bf16.msra.mxu0 0
      %2058 = vmatpush.bf16.msra.mxu0 0
      %2059 = vmatpush.bf16.msra.mxu0 0
      %2060 = vmatpush.bf16.msra.mxu0 %v2051
      %2061 = vmatmul.bf16.gmra.mxu0 %v2039
      %v2062 = vpop.f32.mrf.mxu0
      %v2063 = vadd.f32 0.0, %v2062
      %v2064 = vpop.f32.mrf.mxu0
      %v2065 = vadd.f32 0.0, %v2064
      %2066 = vmatmul.bf16.gmra.mxu0 %v2042
      %v2067 = vpop.f32.mrf.mxu0
      %v2068 = vadd.f32 0.0, %v2067
      %v2069 = vpop.f32.mrf.mxu0
      %v2070 = vadd.f32 0.0, %v2069
      %2071 = vmatmul.bf16.gmra.mxu0 %v2045
      %v2072 = vpop.f32.mrf.mxu0
      %v2073 = vadd.f32 0.0, %v2072
      %v2074 = vpop.f32.mrf.mxu0
      %v2075 = vadd.f32 0.0, %v2074
      %2076 = vmatmul.bf16.gmra.mxu0 %v2048
      %v2077 = vpop.f32.mrf.mxu0
      %v2078 = vadd.f32 0.0, %v2077
      %v2079 = vpop.f32.mrf.mxu0
      %v2080 = vadd.f32 0.0, %v2079
      %2081 = vdwg.mxu0
      %v2082 = vadd.f32 %v1888, %v2063
      %v2083 = vadd.f32 %v1889, %v2065
      %v2084 = vadd.f32 %v1890, %v2068
      %v2085 = vadd.f32 %v1891, %v2070
      %v2086 = vadd.f32 %v1892, %v2073
      %v2087 = vadd.f32 %v1893, %v2075
      %v2088 = vadd.f32 %v1894, %v2078
      %v2089 = vadd.f32 %v1895, %v2080
      %v2090 = vld [vmem:[%s1048] sm:$0xf]
      %v2091 = vld [vmem:[%s1048 + $0x4] sm:$0x1]
      %v2092 = vld [vmem:[%s1048 + $0x8] sm:$0xf]
      %v2093 = vld [vmem:[%s1048 + $0xc] sm:$0x1]
      %v2094 = vld [vmem:[%s1048 + $0x10] sm:$0xf]
      %v2095 = vld [vmem:[%s1048 + $0x14] sm:$0x1]
      %v2096 = vld [vmem:[%s1048 + $0x18] sm:$0xf]
      %v2097 = vld [vmem:[%s1048 + $0x1c] sm:$0x1]
      %v2098 = vld [vmem:[%s1048 + $0x20] sm:$0xf]
      %v2099 = vld [vmem:[%s1048 + $0x24] sm:$0x1]
      %v2100 = vld [vmem:[%s1048 + $0x28] sm:$0xf]
      %v2101 = vld [vmem:[%s1048 + $0x2c] sm:$0x1]
      %v2102 = vld [vmem:[%s1048 + $0x30] sm:$0xf]
      %v2103 = vld [vmem:[%s1048 + $0x34] sm:$0x1]
      %v2104 = vld [vmem:[%s1048 + $0x38] sm:$0xf]
      %v2105 = vld [vmem:[%s1048 + $0x3c] sm:$0x1]
      %v2107 = vshrl.u32 %v2090, 16
      %v2109 = vrot.slane %v2107, 4
      %v2110 = vshll.u32 %v2090, 16
      %v2112 = vrot.slane %v2110, 5
      %v2113 = vor.u32 %v2109, %v2112
      %v2114 = vrot.slane %v2113, 4
      %v2116 = vshll.u32 %v2091, 16
      %v2118 = vrot.slane %v2116, 5
      %v2119 = vsel %vm1384, %v2114, %v2118
      %v2121 = vshrl.u32 %v2092, 16
      %v2123 = vrot.slane %v2121, 4
      %v2124 = vshll.u32 %v2092, 16
      %v2126 = vrot.slane %v2124, 5
      %v2127 = vor.u32 %v2123, %v2126
      %v2128 = vrot.slane %v2127, 4
      %v2130 = vshll.u32 %v2093, 16
      %v2132 = vrot.slane %v2130, 5
      %v2133 = vsel %vm1384, %v2128, %v2132
      %v2135 = vshrl.u32 %v2094, 16
      %v2137 = vrot.slane %v2135, 4
      %v2138 = vshll.u32 %v2094, 16
      %v2140 = vrot.slane %v2138, 5
      %v2141 = vor.u32 %v2137, %v2140
      %v2142 = vrot.slane %v2141, 4
      %v2144 = vshll.u32 %v2095, 16
      %v2146 = vrot.slane %v2144, 5
      %v2147 = vsel %vm1384, %v2142, %v2146
      %v2149 = vshrl.u32 %v2096, 16
      %v2151 = vrot.slane %v2149, 4
      %v2152 = vshll.u32 %v2096, 16
      %v2154 = vrot.slane %v2152, 5
      %v2155 = vor.u32 %v2151, %v2154
      %v2156 = vrot.slane %v2155, 4
      %v2158 = vshll.u32 %v2097, 16
      %v2160 = vrot.slane %v2158, 5
      %v2161 = vsel %vm1384, %v2156, %v2160
      %v2163 = vshrl.u32 %v2098, 16
      %v2165 = vrot.slane %v2163, 4
      %v2166 = vshll.u32 %v2098, 16
      %v2168 = vrot.slane %v2166, 5
      %v2169 = vor.u32 %v2165, %v2168
      %v2170 = vrot.slane %v2169, 4
      %v2172 = vshll.u32 %v2099, 16
      %v2174 = vrot.slane %v2172, 5
      %v2175 = vsel %vm1384, %v2170, %v2174
      %v2177 = vshrl.u32 %v2100, 16
      %v2179 = vrot.slane %v2177, 4
      %v2180 = vshll.u32 %v2100, 16
      %v2182 = vrot.slane %v2180, 5
      %v2183 = vor.u32 %v2179, %v2182
      %v2184 = vrot.slane %v2183, 4
      %v2186 = vshll.u32 %v2101, 16
      %v2188 = vrot.slane %v2186, 5
      %v2189 = vsel %vm1384, %v2184, %v2188
      %v2191 = vshrl.u32 %v2102, 16
      %v2193 = vrot.slane %v2191, 4
      %v2194 = vshll.u32 %v2102, 16
      %v2196 = vrot.slane %v2194, 5
      %v2197 = vor.u32 %v2193, %v2196
      %v2198 = vrot.slane %v2197, 4
      %v2200 = vshll.u32 %v2103, 16
      %v2202 = vrot.slane %v2200, 5
      %v2203 = vsel %vm1384, %v2198, %v2202
      %v2205 = vshrl.u32 %v2104, 16
      %v2207 = vrot.slane %v2205, 4
      %v2208 = vshll.u32 %v2104, 16
      %v2210 = vrot.slane %v2208, 5
      %v2211 = vor.u32 %v2207, %v2210
      %v2212 = vrot.slane %v2211, 4
      %v2214 = vshll.u32 %v2105, 16
      %v2216 = vrot.slane %v2214, 5
      %v2217 = vsel %vm1384, %v2212, %v2216
      %s2218 = scalar_lea.vmem %s2, 10
      %v2219 = vld [vmem:[%s2218] sm:$0x3]
      %v2220 = vunpack.c.l.b16 %v2119
      %v2221 = vunpack.c.l.b16 %v2133
      %v2222 = vunpack.c.l.b16 %v2147
      %v2223 = vunpack.c.l.b16 %v2161
      %v2224 = vunpack.c.l.b16 %v2175
      %v2225 = vunpack.c.l.b16 %v2189
      %v2226 = vunpack.c.l.b16 %v2203
      %v2227 = vunpack.c.l.b16 %v2217
      %v2228 = vpack.c.b16 %v2221, %v2220
      %v2229 = vpack.c.b16 %v2223, %v2222
      %v2230 = vpack.c.b16 %v2225, %v2224
      %v2231 = vpack.c.b16 %v2227, %v2226
      %v2233 = vsel %vm768, %v2228, 0
      %v2236 = vsel %vm768, %v2229, 0
      %v2239 = vsel %vm768, %v2230, 0
      %v2242 = vsel %vm768, %v2231, 0
      %v2245 = vsel %vm1523, %v2219, 0
      %2247 = vmatpush.bf16.msra.mxu0 0
      %2248 = vmatpush.bf16.msra.mxu0 0
      %2249 = vmatpush.bf16.msra.mxu0 0
      %2250 = vmatpush.bf16.msra.mxu0 0
      %2251 = vmatpush.bf16.msra.mxu0 0
      %2252 = vmatpush.bf16.msra.mxu0 0
      %2253 = vmatpush.bf16.msra.mxu0 0
      %2254 = vmatpush.bf16.msra.mxu0 %v2245
      %2255 = vmatmul.bf16.gmra.mxu0 %v2233
      %v2256 = vpop.f32.mrf.mxu0
      %v2257 = vadd.f32 0.0, %v2256
      %v2258 = vpop.f32.mrf.mxu0
      %v2259 = vadd.f32 0.0, %v2258
      %2260 = vmatmul.bf16.gmra.mxu0 %v2236
      %v2261 = vpop.f32.mrf.mxu0
      %v2262 = vadd.f32 0.0, %v2261
      %v2263 = vpop.f32.mrf.mxu0
      %v2264 = vadd.f32 0.0, %v2263
      %2265 = vmatmul.bf16.gmra.mxu0 %v2239
      %v2266 = vpop.f32.mrf.mxu0
      %v2267 = vadd.f32 0.0, %v2266
      %v2268 = vpop.f32.mrf.mxu0
      %v2269 = vadd.f32 0.0, %v2268
      %2270 = vmatmul.bf16.gmra.mxu0 %v2242
      %v2271 = vpop.f32.mrf.mxu0
      %v2272 = vadd.f32 0.0, %v2271
      %v2273 = vpop.f32.mrf.mxu0
      %v2274 = vadd.f32 0.0, %v2273
      %2275 = vdwg.mxu0
      %v2276 = vadd.f32 %v2082, %v2257
      %v2277 = vadd.f32 %v2083, %v2259
      %v2278 = vadd.f32 %v2084, %v2262
      %v2279 = vadd.f32 %v2085, %v2264
      %v2280 = vadd.f32 %v2086, %v2267
      %v2281 = vadd.f32 %v2087, %v2269
      %v2282 = vadd.f32 %v2088, %v2272
      %v2283 = vadd.f32 %v2089, %v2274
      %v2284 = vld [vmem:[%s1306] sm:$0xf]
      %v2285 = vld [vmem:[%s1306 + $0x8] sm:$0xf]
      %v2286 = vld [vmem:[%s1306 + $0x10] sm:$0xf]
      %v2287 = vld [vmem:[%s1306 + $0x18] sm:$0xf]
      %v2288 = vld [vmem:[%s1306 + $0x20] sm:$0xf]
      %v2289 = vld [vmem:[%s1306 + $0x28] sm:$0xf]
      %v2290 = vld [vmem:[%s1306 + $0x30] sm:$0xf]
      %v2291 = vld [vmem:[%s1306 + $0x38] sm:$0xf]
      %s2292 = scalar_lea.vmem %s2, 12
      %v2293 = vld [vmem:[%s2292] sm:$0x3]
      %v2302 = vunpack.c.l.b16 %v2284
      %v2303 = vunpack.c.l.b16 %v2285
      %v2304 = vunpack.c.l.b16 %v2286
      %v2305 = vunpack.c.l.b16 %v2287
      %v2306 = vunpack.c.l.b16 %v2288
      %v2307 = vunpack.c.l.b16 %v2289
      %v2308 = vunpack.c.l.b16 %v2290
      %v2309 = vunpack.c.l.b16 %v2291
      %v2310 = vpack.c.b16 %v2303, %v2302
      %v2311 = vpack.c.b16 %v2305, %v2304
      %v2312 = vpack.c.b16 %v2307, %v2306
      %v2313 = vpack.c.b16 %v2309, %v2308
      %v2315 = vsel %vm768, %v2310, 0
      %v2318 = vsel %vm768, %v2311, 0
      %v2321 = vsel %vm768, %v2312, 0
      %v2324 = vsel %vm768, %v2313, 0
      %v2327 = vsel %vm1523, %v2293, 0
      %2329 = vmatpush.bf16.msra.mxu0 0
      %2330 = vmatpush.bf16.msra.mxu0 0
      %2331 = vmatpush.bf16.msra.mxu0 0
      %2332 = vmatpush.bf16.msra.mxu0 0
      %2333 = vmatpush.bf16.msra.mxu0 0
      %2334 = vmatpush.bf16.msra.mxu0 0
      %2335 = vmatpush.bf16.msra.mxu0 0
      %2336 = vmatpush.bf16.msra.mxu0 %v2327
      %2337 = vmatmul.bf16.gmra.mxu0 %v2315
      %v2338 = vpop.f32.mrf.mxu0
      %v2339 = vadd.f32 0.0, %v2338
      %v2340 = vpop.f32.mrf.mxu0
      %v2341 = vadd.f32 0.0, %v2340
      %2342 = vmatmul.bf16.gmra.mxu0 %v2318
      %v2343 = vpop.f32.mrf.mxu0
      %v2344 = vadd.f32 0.0, %v2343
      %v2345 = vpop.f32.mrf.mxu0
      %v2346 = vadd.f32 0.0, %v2345
      %2347 = vmatmul.bf16.gmra.mxu0 %v2321
      %v2348 = vpop.f32.mrf.mxu0
      %v2349 = vadd.f32 0.0, %v2348
      %v2350 = vpop.f32.mrf.mxu0
      %v2351 = vadd.f32 0.0, %v2350
      %2352 = vmatmul.bf16.gmra.mxu0 %v2324
      %v2353 = vpop.f32.mrf.mxu0
      %v2354 = vadd.f32 0.0, %v2353
      %v2355 = vpop.f32.mrf.mxu0
      %v2356 = vadd.f32 0.0, %v2355
      %2357 = vdwg.mxu0
      %v2358 = vadd.f32 %v2276, %v2339
      %v2359 = vadd.f32 %v2277, %v2341
      %v2360 = vadd.f32 %v2278, %v2344
      %v2361 = vadd.f32 %v2279, %v2346
      %v2362 = vadd.f32 %v2280, %v2349
      %v2363 = vadd.f32 %v2281, %v2351
      %v2364 = vadd.f32 %v2282, %v2354
      %v2365 = vadd.f32 %v2283, %v2356
      %v2366 = vld [vmem:[%s1177] sm:$0xf]
      %v2367 = vld [vmem:[%s1177 + $0x4] sm:$0x1]
      %v2368 = vld [vmem:[%s1177 + $0x8] sm:$0xf]
      %v2369 = vld [vmem:[%s1177 + $0xc] sm:$0x1]
      %v2370 = vld [vmem:[%s1177 + $0x10] sm:$0xf]
      %v2371 = vld [vmem:[%s1177 + $0x14] sm:$0x1]
      %v2372 = vld [vmem:[%s1177 + $0x18] sm:$0xf]
      %v2373 = vld [vmem:[%s1177 + $0x1c] sm:$0x1]
      %v2374 = vld [vmem:[%s1177 + $0x20] sm:$0xf]
      %v2375 = vld [vmem:[%s1177 + $0x24] sm:$0x1]
      %v2376 = vld [vmem:[%s1177 + $0x28] sm:$0xf]
      %v2377 = vld [vmem:[%s1177 + $0x2c] sm:$0x1]
      %v2378 = vld [vmem:[%s1177 + $0x30] sm:$0xf]
      %v2379 = vld [vmem:[%s1177 + $0x34] sm:$0x1]
      %v2380 = vld [vmem:[%s1177 + $0x38] sm:$0xf]
      %v2381 = vld [vmem:[%s1177 + $0x3c] sm:$0x1]
      %v2383 = vshrl.u32 %v2366, 16
      %v2385 = vrot.slane %v2383, 4
      %v2386 = vshll.u32 %v2366, 16
      %v2388 = vrot.slane %v2386, 5
      %v2389 = vor.u32 %v2385, %v2388
      %v2390 = vrot.slane %v2389, 4
      %v2392 = vshll.u32 %v2367, 16
      %v2394 = vrot.slane %v2392, 5
      %v2395 = vsel %vm1384, %v2390, %v2394
      %v2397 = vshrl.u32 %v2368, 16
      %v2399 = vrot.slane %v2397, 4
      %v2400 = vshll.u32 %v2368, 16
      %v2402 = vrot.slane %v2400, 5
      %v2403 = vor.u32 %v2399, %v2402
      %v2404 = vrot.slane %v2403, 4
      %v2406 = vshll.u32 %v2369, 16
      %v2408 = vrot.slane %v2406, 5
      %v2409 = vsel %vm1384, %v2404, %v2408
      %v2411 = vshrl.u32 %v2370, 16
      %v2413 = vrot.slane %v2411, 4
      %v2414 = vshll.u32 %v2370, 16
      %v2416 = vrot.slane %v2414, 5
      %v2417 = vor.u32 %v2413, %v2416
      %v2418 = vrot.slane %v2417, 4
      %v2420 = vshll.u32 %v2371, 16
      %v2422 = vrot.slane %v2420, 5
      %v2423 = vsel %vm1384, %v2418, %v2422
      %v2425 = vshrl.u32 %v2372, 16
      %v2427 = vrot.slane %v2425, 4
      %v2428 = vshll.u32 %v2372, 16
      %v2430 = vrot.slane %v2428, 5
      %v2431 = vor.u32 %v2427, %v2430
      %v2432 = vrot.slane %v2431, 4
      %v2434 = vshll.u32 %v2373, 16
      %v2436 = vrot.slane %v2434, 5
      %v2437 = vsel %vm1384, %v2432, %v2436
      %v2439 = vshrl.u32 %v2374, 16
      %v2441 = vrot.slane %v2439, 4
      %v2442 = vshll.u32 %v2374, 16
      %v2444 = vrot.slane %v2442, 5
      %v2445 = vor.u32 %v2441, %v2444
      %v2446 = vrot.slane %v2445, 4
      %v2448 = vshll.u32 %v2375, 16
      %v2450 = vrot.slane %v2448, 5
      %v2451 = vsel %vm1384, %v2446, %v2450
      %v2453 = vshrl.u32 %v2376, 16
      %v2455 = vrot.slane %v2453, 4
      %v2456 = vshll.u32 %v2376, 16
      %v2458 = vrot.slane %v2456, 5
      %v2459 = vor.u32 %v2455, %v2458
      %v2460 = vrot.slane %v2459, 4
      %v2462 = vshll.u32 %v2377, 16
      %v2464 = vrot.slane %v2462, 5
      %v2465 = vsel %vm1384, %v2460, %v2464
      %v2467 = vshrl.u32 %v2378, 16
      %v2469 = vrot.slane %v2467, 4
      %v2470 = vshll.u32 %v2378, 16
      %v2472 = vrot.slane %v2470, 5
      %v2473 = vor.u32 %v2469, %v2472
      %v2474 = vrot.slane %v2473, 4
      %v2476 = vshll.u32 %v2379, 16
      %v2478 = vrot.slane %v2476, 5
      %v2479 = vsel %vm1384, %v2474, %v2478
      %v2481 = vshrl.u32 %v2380, 16
      %v2483 = vrot.slane %v2481, 4
      %v2484 = vshll.u32 %v2380, 16
      %v2486 = vrot.slane %v2484, 5
      %v2487 = vor.u32 %v2483, %v2486
      %v2488 = vrot.slane %v2487, 4
      %v2490 = vshll.u32 %v2381, 16
      %v2492 = vrot.slane %v2490, 5
      %v2493 = vsel %vm1384, %v2488, %v2492
      %s2494 = scalar_lea.vmem %s2, 14
      %v2495 = vld [vmem:[%s2494] sm:$0x3]
      %v2496 = vunpack.c.l.b16 %v2395
      %v2497 = vunpack.c.l.b16 %v2409
      %v2498 = vunpack.c.l.b16 %v2423
      %v2499 = vunpack.c.l.b16 %v2437
      %v2500 = vunpack.c.l.b16 %v2451
      %v2501 = vunpack.c.l.b16 %v2465
      %v2502 = vunpack.c.l.b16 %v2479
      %v2503 = vunpack.c.l.b16 %v2493
      %v2504 = vpack.c.b16 %v2497, %v2496
      %v2505 = vpack.c.b16 %v2499, %v2498
      %v2506 = vpack.c.b16 %v2501, %v2500
      %v2507 = vpack.c.b16 %v2503, %v2502
      %v2509 = vsel %vm768, %v2504, 0
      %v2512 = vsel %vm768, %v2505, 0
      %v2515 = vsel %vm768, %v2506, 0
      %v2518 = vsel %vm768, %v2507, 0
      %v2521 = vsel %vm1523, %v2495, 0
      %2523 = vmatpush.bf16.msra.mxu0 0
      %2524 = vmatpush.bf16.msra.mxu0 0
      %2525 = vmatpush.bf16.msra.mxu0 0
      %2526 = vmatpush.bf16.msra.mxu0 0
      %2527 = vmatpush.bf16.msra.mxu0 0
      %2528 = vmatpush.bf16.msra.mxu0 0
      %2529 = vmatpush.bf16.msra.mxu0 0
      %2530 = vmatpush.bf16.msra.mxu0 %v2521
      %2531 = vmatmul.bf16.gmra.mxu0 %v2509
      %v2532 = vpop.f32.mrf.mxu0
      %v2533 = vadd.f32 0.0, %v2532
      %v2534 = vpop.f32.mrf.mxu0
      %v2535 = vadd.f32 0.0, %v2534
      %2536 = vmatmul.bf16.gmra.mxu0 %v2512
      %v2537 = vpop.f32.mrf.mxu0
      %v2538 = vadd.f32 0.0, %v2537
      %v2539 = vpop.f32.mrf.mxu0
      %v2540 = vadd.f32 0.0, %v2539
      %2541 = vmatmul.bf16.gmra.mxu0 %v2515
      %v2542 = vpop.f32.mrf.mxu0
      %v2543 = vadd.f32 0.0, %v2542
      %v2544 = vpop.f32.mrf.mxu0
      %v2545 = vadd.f32 0.0, %v2544
      %2546 = vmatmul.bf16.gmra.mxu0 %v2518
      %v2547 = vpop.f32.mrf.mxu0
      %v2548 = vadd.f32 0.0, %v2547
      %v2549 = vpop.f32.mrf.mxu0
      %v2550 = vadd.f32 0.0, %v2549
      %2551 = vdwg.mxu0
      %v2552 = vadd.f32 %v2358, %v2533
      %v2553 = vadd.f32 %v2359, %v2535
      %v2554 = vadd.f32 %v2360, %v2538
      %v2555 = vadd.f32 %v2361, %v2540
      %v2556 = vadd.f32 %v2362, %v2543
      %v2557 = vadd.f32 %v2363, %v2545
      %v2558 = vadd.f32 %v2364, %v2548
      %v2559 = vadd.f32 %v2365, %v2550
      %v2560 = vld [vmem:[%s1306] sm:$0xf]
      %v2561 = vld [vmem:[%s1306 + $0x4] sm:$0x1]
      %v2562 = vld [vmem:[%s1306 + $0x8] sm:$0xf]
      %v2563 = vld [vmem:[%s1306 + $0xc] sm:$0x1]
      %v2564 = vld [vmem:[%s1306 + $0x10] sm:$0xf]
      %v2565 = vld [vmem:[%s1306 + $0x14] sm:$0x1]
      %v2566 = vld [vmem:[%s1306 + $0x18] sm:$0xf]
      %v2567 = vld [vmem:[%s1306 + $0x1c] sm:$0x1]
      %v2568 = vld [vmem:[%s1306 + $0x20] sm:$0xf]
      %v2569 = vld [vmem:[%s1306 + $0x24] sm:$0x1]
      %v2570 = vld [vmem:[%s1306 + $0x28] sm:$0xf]
      %v2571 = vld [vmem:[%s1306 + $0x2c] sm:$0x1]
      %v2572 = vld [vmem:[%s1306 + $0x30] sm:$0xf]
      %v2573 = vld [vmem:[%s1306 + $0x34] sm:$0x1]
      %v2574 = vld [vmem:[%s1306 + $0x38] sm:$0xf]
      %v2575 = vld [vmem:[%s1306 + $0x3c] sm:$0x1]
      %v2577 = vshrl.u32 %v2560, 16
      %v2579 = vrot.slane %v2577, 4
      %v2580 = vshll.u32 %v2560, 16
      %v2582 = vrot.slane %v2580, 5
      %v2583 = vor.u32 %v2579, %v2582
      %v2584 = vrot.slane %v2583, 4
      %v2586 = vshll.u32 %v2561, 16
      %v2588 = vrot.slane %v2586, 5
      %v2589 = vsel %vm1384, %v2584, %v2588
      %v2591 = vshrl.u32 %v2562, 16
      %v2593 = vrot.slane %v2591, 4
      %v2594 = vshll.u32 %v2562, 16
      %v2596 = vrot.slane %v2594, 5
      %v2597 = vor.u32 %v2593, %v2596
      %v2598 = vrot.slane %v2597, 4
      %v2600 = vshll.u32 %v2563, 16
      %v2602 = vrot.slane %v2600, 5
      %v2603 = vsel %vm1384, %v2598, %v2602
      %v2605 = vshrl.u32 %v2564, 16
      %v2607 = vrot.slane %v2605, 4
      %v2608 = vshll.u32 %v2564, 16
      %v2610 = vrot.slane %v2608, 5
      %v2611 = vor.u32 %v2607, %v2610
      %v2612 = vrot.slane %v2611, 4
      %v2614 = vshll.u32 %v2565, 16
      %v2616 = vrot.slane %v2614, 5
      %v2617 = vsel %vm1384, %v2612, %v2616
      %v2619 = vshrl.u32 %v2566, 16
      %v2621 = vrot.slane %v2619, 4
      %v2622 = vshll.u32 %v2566, 16
      %v2624 = vrot.slane %v2622, 5
      %v2625 = vor.u32 %v2621, %v2624
      %v2626 = vrot.slane %v2625, 4
      %v2628 = vshll.u32 %v2567, 16
      %v2630 = vrot.slane %v2628, 5
      %v2631 = vsel %vm1384, %v2626, %v2630
      %v2633 = vshrl.u32 %v2568, 16
      %v2635 = vrot.slane %v2633, 4
      %v2636 = vshll.u32 %v2568, 16
      %v2638 = vrot.slane %v2636, 5
      %v2639 = vor.u32 %v2635, %v2638
      %v2640 = vrot.slane %v2639, 4
      %v2642 = vshll.u32 %v2569, 16
      %v2644 = vrot.slane %v2642, 5
      %v2645 = vsel %vm1384, %v2640, %v2644
      %v2647 = vshrl.u32 %v2570, 16
      %v2649 = vrot.slane %v2647, 4
      %v2650 = vshll.u32 %v2570, 16
      %v2652 = vrot.slane %v2650, 5
      %v2653 = vor.u32 %v2649, %v2652
      %v2654 = vrot.slane %v2653, 4
      %v2656 = vshll.u32 %v2571, 16
      %v2658 = vrot.slane %v2656, 5
      %v2659 = vsel %vm1384, %v2654, %v2658
      %v2661 = vshrl.u32 %v2572, 16
      %v2663 = vrot.slane %v2661, 4
      %v2664 = vshll.u32 %v2572, 16
      %v2666 = vrot.slane %v2664, 5
      %v2667 = vor.u32 %v2663, %v2666
      %v2668 = vrot.slane %v2667, 4
      %v2670 = vshll.u32 %v2573, 16
      %v2672 = vrot.slane %v2670, 5
      %v2673 = vsel %vm1384, %v2668, %v2672
      %v2675 = vshrl.u32 %v2574, 16
      %v2677 = vrot.slane %v2675, 4
      %v2678 = vshll.u32 %v2574, 16
      %v2680 = vrot.slane %v2678, 5
      %v2681 = vor.u32 %v2677, %v2680
      %v2682 = vrot.slane %v2681, 4
      %v2684 = vshll.u32 %v2575, 16
      %v2686 = vrot.slane %v2684, 5
      %v2687 = vsel %vm1384, %v2682, %v2686
      %s2688 = scalar_lea.vmem %s2, 16
      %v2689 = vld [vmem:[%s2688] sm:$0x3]
      %v2690 = vunpack.c.l.b16 %v2589
      %v2691 = vunpack.c.l.b16 %v2603
      %v2692 = vunpack.c.l.b16 %v2617
      %v2693 = vunpack.c.l.b16 %v2631
      %v2694 = vunpack.c.l.b16 %v2645
      %v2695 = vunpack.c.l.b16 %v2659
      %v2696 = vunpack.c.l.b16 %v2673
      %v2697 = vunpack.c.l.b16 %v2687
      %v2698 = vpack.c.b16 %v2691, %v2690
      %v2699 = vpack.c.b16 %v2693, %v2692
      %v2700 = vpack.c.b16 %v2695, %v2694
      %v2701 = vpack.c.b16 %v2697, %v2696
      %v2703 = vsel %vm768, %v2698, 0
      %v2706 = vsel %vm768, %v2699, 0
      %v2709 = vsel %vm768, %v2700, 0
      %v2712 = vsel %vm768, %v2701, 0
      %v2715 = vsel %vm1523, %v2689, 0
      %2717 = vmatpush.bf16.msra.mxu0 0
      %2718 = vmatpush.bf16.msra.mxu0 0
      %2719 = vmatpush.bf16.msra.mxu0 0
      %2720 = vmatpush.bf16.msra.mxu0 0
      %2721 = vmatpush.bf16.msra.mxu0 0
      %2722 = vmatpush.bf16.msra.mxu0 0
      %2723 = vmatpush.bf16.msra.mxu0 0
      %2724 = vmatpush.bf16.msra.mxu0 %v2715
      %2725 = vmatmul.bf16.gmra.mxu0 %v2703
      %v2726 = vpop.f32.mrf.mxu0
      %v2727 = vadd.f32 0.0, %v2726
      %v2728 = vpop.f32.mrf.mxu0
      %v2729 = vadd.f32 0.0, %v2728
      %2730 = vmatmul.bf16.gmra.mxu0 %v2706
      %v2731 = vpop.f32.mrf.mxu0
      %v2732 = vadd.f32 0.0, %v2731
      %v2733 = vpop.f32.mrf.mxu0
      %v2734 = vadd.f32 0.0, %v2733
      %2735 = vmatmul.bf16.gmra.mxu0 %v2709
      %v2736 = vpop.f32.mrf.mxu0
      %v2737 = vadd.f32 0.0, %v2736
      %v2738 = vpop.f32.mrf.mxu0
      %v2739 = vadd.f32 0.0, %v2738
      %2740 = vmatmul.bf16.gmra.mxu0 %v2712
      %v2741 = vpop.f32.mrf.mxu0
      %v2742 = vadd.f32 0.0, %v2741
      %v2743 = vpop.f32.mrf.mxu0
      %v2744 = vadd.f32 0.0, %v2743
      %2745 = vdwg.mxu0
      %v2746 = vadd.f32 %v2552, %v2727
      %v2747 = vadd.f32 %v2553, %v2729
      %v2748 = vadd.f32 %v2554, %v2732
      %v2749 = vadd.f32 %v2555, %v2734
      %v2750 = vadd.f32 %v2556, %v2737
      %v2751 = vadd.f32 %v2557, %v2739
      %v2752 = vadd.f32 %v2558, %v2742
      %v2753 = vadd.f32 %v2559, %v2744
      %v2754 = vld [vmem:[%s3] sm:$0xf]
      %v2756 = vsel %vm768, %v447, 0
      %v2759 = vsel %vm768, %v448, 0
      %v2762 = vsel %vm768, %v449, 0
      %v2765 = vsel %vm768, %v450, 0
      %v2768 = vsel %vm768, %v451, 0
      %v2771 = vsel %vm768, %v452, 0
      %v2774 = vsel %vm768, %v453, 0
      %v2777 = vsel %vm768, %v454, 0
      %vm2779 = vcmask 1043456
      %v2781 = vsel %vm2779, %v2754, 0
      %2783 = vmatpush.msra.mxu0 0.0
      %2784 = vmatpush.msra.mxu0 0.0
      %2785 = vmatpush.msra.mxu0 0.0
      %2786 = vmatpush.msra.mxu0 0.0
      %2787 = vmatpush.msra.mxu0 0.0
      %2788 = vmatpush.msra.mxu0 0.0
      %2789 = vmatpush.msra.mxu0 0.0
      %2790 = vmatpush.msra.mxu0 0.0
      %2791 = vmatpush.msra.mxu0 0.0
      %2792 = vmatpush.msra.mxu0 0.0
      %2793 = vmatpush.msra.mxu0 0.0
      %2794 = vmatpush.msra.mxu0 0.0
      %2795 = vmatpush.msra.mxu0 0.0
      %2796 = vmatpush.msra.mxu0 0.0
      %2797 = vmatpush.msra.mxu0 0.0
      %2798 = vmatpush.msra.mxu0 %v2781
      %2799 = vmatmul.f32.gmra.mxu0 %v2756
      %v2800 = vpop.f32.mrf.mxu0
      %v2801 = vadd.f32 0.0, %v2800
      %2802 = vmatmul.f32.gmra.mxu0 %v2759
      %v2803 = vpop.f32.mrf.mxu0
      %v2804 = vadd.f32 0.0, %v2803
      %2805 = vmatmul.f32.gmra.mxu0 %v2762
      %v2806 = vpop.f32.mrf.mxu0
      %v2807 = vadd.f32 0.0, %v2806
      %2808 = vmatmul.f32.gmra.mxu0 %v2765
      %v2809 = vpop.f32.mrf.mxu0
      %v2810 = vadd.f32 0.0, %v2809
      %2811 = vmatmul.f32.gmra.mxu0 %v2768
      %v2812 = vpop.f32.mrf.mxu0
      %v2813 = vadd.f32 0.0, %v2812
      %2814 = vmatmul.f32.gmra.mxu0 %v2771
      %v2815 = vpop.f32.mrf.mxu0
      %v2816 = vadd.f32 0.0, %v2815
      %2817 = vmatmul.f32.gmra.mxu0 %v2774
      %v2818 = vpop.f32.mrf.mxu0
      %v2819 = vadd.f32 0.0, %v2818
      %2820 = vmatmul.f32.gmra.mxu0 %v2777
      %v2821 = vpop.f32.mrf.mxu0
      %v2822 = vadd.f32 0.0, %v2821
      %2823 = vdwg.mxu0
      %v2824 = vadd.f32 %v2746, %v2801
      %v2825 = vadd.f32 %v2747, %v2804
      %v2826 = vadd.f32 %v2748, %v2807
      %v2827 = vadd.f32 %v2749, %v2810
      %v2828 = vadd.f32 %v2750, %v2813
      %v2829 = vadd.f32 %v2751, %v2816
      %v2830 = vadd.f32 %v2752, %v2819
      %v2831 = vadd.f32 %v2753, %v2822
      %v2832 = vld [vmem:[%s4] sm:$0x1]
      %v2834 = vperm.slane %v2832, 0
      %v2836 = vadd.f32 %v2824, %v2834
      %v2837 = vadd.f32 %v2825, %v2834
      %v2838 = vadd.f32 %v2826, %v2834
      %v2839 = vadd.f32 %v2827, %v2834
      %v2840 = vadd.f32 %v2828, %v2834
      %v2841 = vadd.f32 %v2829, %v2834
      %v2842 = vadd.f32 %v2830, %v2834
      %v2843 = vadd.f32 %v2831, %v2834
      %2844 = vxpose.xlu0.b32.start [1/16] %v2836, 128
      %2845 = vxpose.xlu0.b32.cont [2/16] %v2837, 128
      %2846 = vxpose.xlu0.b32.cont [3/16] %v2838, 128
      %2847 = vxpose.xlu0.b32.cont [4/16] %v2839, 128
      %2848 = vxpose.xlu0.b32.cont [5/16] %v2840, 128
      %2849 = vxpose.xlu0.b32.cont [6/16] %v2841, 128
      %2850 = vxpose.xlu0.b32.cont [7/16] %v2842, 128
      %2851 = vxpose.xlu0.b32.cont [8/16] %v2843, 128
      %2852 = vxpose.xlu0.b32.cont [9/16] 0.0, 128
      %2853 = vxpose.xlu0.b32.cont [10/16] 0.0, 128
      %2854 = vxpose.xlu0.b32.cont [11/16] 0.0, 128
      %2855 = vxpose.xlu0.b32.cont [12/16] 0.0, 128
      %2856 = vxpose.xlu0.b32.cont [13/16] 0.0, 128
      %2857 = vxpose.xlu0.b32.cont [14/16] 0.0, 128
      %2858 = vxpose.xlu0.b32.cont [15/16] 0.0, 128
      %2859 = vxpose.xlu0.b32.end [16/16] 0.0, 128
      %v2860 = vpop.trf.xlu0
      %v2861 = vpop.trf.xlu0
      %v2862 = vpop.trf.xlu0
      %v2863 = vpop.trf.xlu0
      %v2864 = vpop.trf.xlu0
      %v2865 = vpop.trf.xlu0
      %v2866 = vpop.trf.xlu0
      %v2867 = vpop.trf.xlu0
      %v2868 = vpop.trf.xlu0
      %v2869 = vpop.trf.xlu0
      %v2870 = vpop.trf.xlu0
      %v2871 = vpop.trf.xlu0
      %v2872 = vpop.trf.xlu0
      %v2873 = vpop.trf.xlu0
      %v2874 = vpop.trf.xlu0
      %v2875 = vpop.trf.xlu0
      %vm2876 = vcmask 523264
      %2877 = vst.msk [vmem:[%s259] sm:$0xff] %vm2876, %v2860
      %p2878 = scmp.lt.s32.totalorder %s22, 1
      %s2879 = scalar_select %p2878, %s22, 1
      %p2880 = scmp.lt.s32.totalorder %s21, 1
      %s2881 = scalar_select %p2880, %s21, 1
      %s2882 = smul.addr %s2879, 2
      %s2883 = sadd.s32 %s2881, %s2882
      %s2884 = smul.addr %s2883, 8
      %s2885 = scalar_lea.vmem %s5, %s2884
      // Predicated region
      $region45: #{spiking_ped_forward.1} parent=39 // pred_check
        %p2886 = pneg %p161
      $region46: #{spiking_ped_forward.1} parent=39 // pred_check_branch
        %2888 = sbr.rel (%p2886) target = $region48
      $region47: #{spiking_ped_forward.1} parent=39 // pred_region
        _
      $region48: #{spiking_ped_forward.1} parent=39 // pred_fallthru
        _
    $region40: #{spiking_ped_forward.1} parent=5 // pred_fallthru
      _
    %p2889 = scmp.le.s32.totalorder 2, %s12
    // Predicated region
    $region49: #{spiking_ped_forward.1} parent=5 // pred_check
      %p2890 = pneg %p2889
    $region50: #{spiking_ped_forward.1} parent=5 // pred_check_branch
      %2892 = sbr.rel (%p2890) target = $region52
    $region51: #{spiking_ped_forward.1} parent=5 // pred_region
      %s2893 = ssub.s32 %s12, 2
      // Predicated region
      $region53: #{spiking_ped_forward.1} parent=51 // pred_check
        %p2894 = pneg %p167
      $region54: #{spiking_ped_forward.1} parent=51 // pred_check_branch
        %2896 = sbr.rel (%p2894) target = $region56
      $region55: #{spiking_ped_forward.1} parent=51 // pred_region
        %p2897 = scmp.lt.s32.totalorder %s24, 1
        %s2898 = scalar_select %p2897, %s24, 1
        %p2899 = scmp.lt.s32.totalorder %s23, 1
        %s2900 = scalar_select %p2899, %s23, 1
        %s2901 = smul.addr %s2898, 2
        %s2902 = sadd.s32 %s2900, %s2901
        %s2903 = smul.addr %s2902, 8
        %s2904 = scalar_lea.vmem %s5, %s2903
      $region56: #{spiking_ped_forward.1} parent=51 // pred_fallthru
        _
    $region52: #{spiking_ped_forward.1} parent=5 // pred_fallthru
      _
  $region6: #{spiking_ped_forward.1} parent=0 // loop_footer
    %s16 = sadd.s32 1, %s12
  $region7: #{spiking_ped_forward.1} parent=0 // loop_footer_branch
    %11 = sbr.rel target = $region3
  $region8: #{spiking_ped_forward.1} parent=0 // loop_exit
    _

</llo_original>
